<compile_context>
chip_gen: v7x
topology: tpu7x:2x2x1
jax: 0.10.0
libtpu: 0.0.40
codegen_flags: <defaults>
</compile_context>

<pallas_src>
import functools

import jax
import jax.numpy as jnp
from jax.experimental import pallas as pl
from jax.experimental.pallas import tpu as pltpu


def _lstm_layer_dir_kernel(len_ref, x_ref, wx_ref, wh_ref, b_ref,
                           out_ref, h_out_ref, xproj_ref,
                           *, T, Bp, H, reverse):
    """One LSTM layer, one direction, full time recurrence in one kernel call.

    len_ref   : (Bp, 1) int32   per-(padded)-batch sequence lengths
    x_ref     : (T*Bp, Din)     layer input, time-major rows
    wx_ref    : (Din, 4H)       W_ih^T  (gate order i, f, g, o)
    wh_ref    : (H, 4H)         W_hh^T
    b_ref     : (1, 4H)         fused bias  b_ih + b_hh
    out_ref   : (T*Bp, H)       per-timestep hidden states (0 where t >= length)
    h_out_ref : (Bp, H)         final hidden state
    xproj_ref : (T*Bp, 4H) f32  scratch: precomputed input projections
    """
    # (1) One wide MXU pass: input projection for every timestep + fused bias.
    xproj_ref[...] = (
        jnp.dot(x_ref[...], wx_ref[...], preferred_element_type=jnp.float32)
        + b_ref[...]
    )

    lens = len_ref[...]          # (Bp, 1) int32
    wh = wh_ref[...]             # hoisted once; resident for the whole loop

    def step(i, carry):
        h, c = carry
        t = (T - 1 - i) if reverse else i
        row = pl.multiple_of(t * Bp, Bp)
        g = xproj_ref[pl.ds(row, Bp), :] + jnp.dot(
            h, wh, preferred_element_type=jnp.float32)
        i_g = jax.nn.sigmoid(g[:, 0 * H:1 * H])
        f_g = jax.nn.sigmoid(g[:, 1 * H:2 * H])
        g_g = jnp.tanh(g[:, 2 * H:3 * H])
        o_g = jax.nn.sigmoid(g[:, 3 * H:4 * H])
        c_new = f_g * c + i_g * g_g
        h_new = o_g * jnp.tanh(c_new)
        valid = t < lens                                # (Bp, 1) bool
        c = jnp.where(valid, c_new, c)
        h = jnp.where(valid, h_new, h)
        out_ref[pl.ds(row, Bp), :] = jnp.where(valid, h_new, 0.0).astype(
            out_ref.dtype)
        return (h, c)

    h0 = jnp.zeros((Bp, H), jnp.float32)
    c0 = jnp.zeros((Bp, H), jnp.float32)
    h_fin, _ = jax.lax.fori_loop(0, T, step, (h0, c0), unroll=True)
    h_out_ref[...] = h_fin.astype(h_out_ref.dtype)


def _run_layer_dir(x2d, len2d, wx, wh, b, *, T, Bp, H, reverse):
    M, Din = x2d.shape
    kernel = functools.partial(_lstm_layer_dir_kernel,
                               T=T, Bp=Bp, H=H, reverse=reverse)
    out, h_fin = pl.pallas_call(
        kernel,
        out_shape=(
            jax.ShapeDtypeStruct((M, H), x2d.dtype),
            jax.ShapeDtypeStruct((Bp, H), x2d.dtype),
        ),
        grid_spec=pltpu.PrefetchScalarGridSpec(
            num_scalar_prefetch=0,
            grid=(1,),
            in_specs=[
                pl.BlockSpec((Bp, 1), lambda i: (0, 0)),       # lengths
                pl.BlockSpec((M, Din), lambda i: (0, 0)),      # x, all timesteps
                pl.BlockSpec((Din, 4 * H), lambda i: (0, 0)),  # W_ih^T
                pl.BlockSpec((H, 4 * H), lambda i: (0, 0)),    # W_hh^T
                pl.BlockSpec((1, 4 * H), lambda i: (0, 0)),    # fused bias
            ],
            out_specs=(
                pl.BlockSpec((M, H), lambda i: (0, 0)),
                pl.BlockSpec((Bp, H), lambda i: (0, 0)),
            ),
            scratch_shapes=[pltpu.VMEM((M, 4 * H), jnp.float32)],
        ),
        compiler_params=pltpu.CompilerParams(
            dimension_semantics=("arbitrary",),
        ),
    )(len2d, x2d, wx, wh, b)
    return out, h_fin


def lstm_forward(x, lengths, params, *, num_layers, bidirectional, hidden_size):
    """
    x       : (T, B, input_size) float32 (time-major, nn.LSTM default)
    lengths : (B,) int32, sorted descending (pack_padded_sequence contract)
    params  : {(layer, direction): (Wx (Din,4H), Wh (H,4H), b (1,4H))}
    returns (hidden, output) as the PyTorch module does.
    """
    T, B, _ = x.shape
    H = hidden_size
    num_dir = 2 if bidirectional else 1
    Bp = ((B + 7) // 8) * 8                 # pad batch to a sublane multiple

    if Bp != B:
        x = jnp.pad(x, ((0, 0), (0, Bp - B), (0, 0)))
        lengths_p = jnp.pad(lengths.astype(jnp.int32), (0, Bp - B))
    else:
        lengths_p = lengths.astype(jnp.int32)
    len2d = lengths_p.reshape(Bp, 1)

    layer_in = x.reshape(T * Bp, x.shape[-1])
    h_finals = []
    for l in range(num_layers):
        dir_outs = []
        for d in range(num_dir):
            wx, wh, b = params[(l, d)]
            out_d, h_fin = _run_layer_dir(layer_in, len2d, wx, wh, b,
                                          T=T, Bp=Bp, H=H, reverse=(d == 1))
            dir_outs.append(out_d)
            h_finals.append(h_fin[:B])
        layer_in = (jnp.concatenate(dir_outs, axis=-1)
                    if num_dir == 2 else dir_outs[0])
        # TODO(synk): training-mode inter-layer dropout not applied
        # (inference path; equivalent to dropout=0 / model.eval()).

    hidden = jnp.stack(h_finals)                         # (L*num_dir, B, H)
    output = layer_in.reshape(T, Bp, num_dir * H)[:, :B]
    return hidden, output


def lstm_reference(x, lengths, params, *, num_layers, bidirectional, hidden_size):
    """Pure-JAX reference with the same packed-sequence semantics."""
    T, B, _ = x.shape
    H = hidden_size
    num_dir = 2 if bidirectional else 1
    h_finals = []
    layer_in = x
    for l in range(num_layers):
        dir_outs = []
        for d in range(num_dir):
            wx, wh, b = params[(l, d)]
            h = jnp.zeros((B, H), jnp.float32)
            c = jnp.zeros((B, H), jnp.float32)
            out_d = jnp.zeros((T, B, H), jnp.float32)
            trange = range(T) if d == 0 else range(T - 1, -1, -1)
            for t in trange:
                g = layer_in[t] @ wx + h @ wh + b
                i_g = jax.nn.sigmoid(g[:, 0 * H:1 * H])
                f_g = jax.nn.sigmoid(g[:, 1 * H:2 * H])
                g_g = jnp.tanh(g[:, 2 * H:3 * H])
                o_g = jax.nn.sigmoid(g[:, 3 * H:4 * H])
                c_new = f_g * c + i_g * g_g
                h_new = o_g * jnp.tanh(c_new)
                mask = (t < lengths)[:, None]
                c = jnp.where(mask, c_new, c)
                h = jnp.where(mask, h_new, h)
                out_d = out_d.at[t].set(jnp.where(mask, h_new, 0.0))
            dir_outs.append(out_d)
            h_finals.append(h)
        layer_in = (jnp.concatenate(dir_outs, axis=-1)
                    if num_dir == 2 else dir_outs[0])
    return jnp.stack(h_finals), layer_in


def make_params(key, *, input_size, hidden_size, num_layers, bidirectional):
    """Mimic the module's init: orthogonal W_hh, kaiming-normal W_ih,
    zero biases with the forget-gate chunk of b_hh set to 1."""
    H = hidden_size
    num_dir = 2 if bidirectional else 1
    params = {}
    for l in range(num_layers):
        d_in = input_size if l == 0 else num_dir * H
        for d in range(num_dir):
            key, k1, k2 = jax.random.split(key, 3)
            w_ih = jax.random.normal(k1, (4 * H, d_in), jnp.float32) * jnp.sqrt(
                2.0 / d_in)                                  # kaiming_normal_
            q, _ = jnp.linalg.qr(
                jax.random.normal(k2, (4 * H, H), jnp.float32))  # orthogonal_
            w_hh = q
            b_hh = jnp.zeros((4 * H,), jnp.float32).at[H:2 * H].set(1.0)
            b = b_hh.reshape(1, 4 * H)                      # b_ih(=0) + b_hh
            # pre-transpose to (in, out) so the kernel does plain x @ W
            params[(l, d)] = (w_ih.T, w_hh.T, b)
    return params


if __name__ == "__main__":
    T = 12
    B = 4
    input_size = 16
    hidden_size = 32
    num_layers = 2
    bidirectional = True
    dropout = 0.0   # TODO(synk): non-zero training-mode dropout not implemented

    key = jax.random.PRNGKey(0)
    kx, kp = jax.random.split(key)
    x = jax.random.normal(kx, (T, B, input_size), jnp.float32)
    lengths = jnp.array([12, 10, 7, 3], jnp.int32)   # descending, max == T

    params = make_params(kp, input_size=input_size, hidden_size=hidden_size,
                         num_layers=num_layers, bidirectional=bidirectional)

    hidden, output = lstm_forward(x, lengths, params, num_layers=num_layers,
                                  bidirectional=bidirectional,
                                  hidden_size=hidden_size)
    hidden, output = jax.block_until_ready((hidden, output))

    hidden_ref, output_ref = lstm_reference(
        x, lengths, params, num_layers=num_layers,
        bidirectional=bidirectional, hidden_size=hidden_size)

    num_dir = 2 if bidirectional else 1
    assert hidden.shape == (num_layers * num_dir, B, hidden_size)
    assert output.shape == (T, B, num_dir * hidden_size)
    assert jnp.allclose(hidden, hidden_ref, atol=2e-4, rtol=2e-4)
    assert jnp.allclose(output, output_ref, atol=2e-4, rtol=2e-4)

    print("KERNEL_OK")
</pallas_src>

<mosaic_0001>
module attributes {stable_mosaic.version = 11 : i64} {
  func.func @_lstm_layer_dir_kernel(%arg0: i32, %arg1: memref<8x1xi32, #tpu.memory_space<vmem>>, %arg2: memref<96x16xf32, #tpu.memory_space<vmem>>, %arg3: memref<16x128xf32, #tpu.memory_space<vmem>>, %arg4: memref<32x128xf32, #tpu.memory_space<vmem>>, %arg5: memref<1x128xf32, #tpu.memory_space<vmem>>, %arg6: memref<96x32xf32, #tpu.memory_space<vmem>>, %arg7: memref<8x32xf32, #tpu.memory_space<vmem>>, %arg8: memref<96x128xf32, #tpu.memory_space<vmem>>) attributes {dimension_semantics = [#tpu.dimension_semantics<arbitrary>], iteration_bounds = array<i64: 1>, scalar_prefetch = 0 : i64, scratch_operands = 1 : i64, tpu.core_type = #tpu.core_type<tc>, window_params = [{pipeline_mode = #tpu.pipeline_mode<synchronous>, transform_indices = @transform_0, window_bounds = array<i64: 8, 1>}, {pipeline_mode = #tpu.pipeline_mode<synchronous>, transform_indices = @transform_1, window_bounds = array<i64: 96, 16>}, {pipeline_mode = #tpu.pipeline_mode<synchronous>, transform_indices = @transform_2, window_bounds = array<i64: 16, 128>}, {pipeline_mode = #tpu.pipeline_mode<synchronous>, transform_indices = @transform_3, window_bounds = array<i64: 32, 128>}, {pipeline_mode = #tpu.pipeline_mode<synchronous>, transform_indices = @transform_4, window_bounds = array<i64: 1, 128>}, {pipeline_mode = #tpu.pipeline_mode<synchronous>, transform_indices = @transform_5, window_bounds = array<i64: 96, 32>}, {pipeline_mode = #tpu.pipeline_mode<synchronous>, transform_indices = @transform_6, window_bounds = array<i64: 8, 32>}]} {
    %c0 = arith.constant 0 : index
    %c0_0 = arith.constant 0 : index
    %0 = vector.load %arg2[%c0, %c0_0] : memref<96x16xf32, #tpu.memory_space<vmem>>, vector<96x16xf32>
    %c0_1 = arith.constant 0 : index
    %c0_2 = arith.constant 0 : index
    %1 = vector.load %arg3[%c0_1, %c0_2] : memref<16x128xf32, #tpu.memory_space<vmem>>, vector<16x128xf32>
    %cst = arith.constant dense<0.000000e+00> : vector<96x128xf32>
    %2 = tpu.matmul %0, %1, %cst {dimension_numbers = #tpu.dot_dimension_numbers<[1], [0], [0], [1], [0, 0, 1, 1], [], []>} : vector<96x16xf32>, vector<16x128xf32>, vector<96x128xf32> -> vector<96x128xf32>
    %c0_3 = arith.constant 0 : index
    %c0_4 = arith.constant 0 : index
    %3 = vector.load %arg5[%c0_3, %c0_4] : memref<1x128xf32, #tpu.memory_space<vmem>>, vector<1x128xf32>
    %4 = vector.broadcast %3 : vector<1x128xf32> to vector<96x128xf32>
    %5 = arith.addf %2, %4 : vector<96x128xf32>
    %c0_5 = arith.constant 0 : index
    %c0_6 = arith.constant 0 : index
    %6 = vector.load %arg8[%c0_5, %c0_6] : memref<96x128xf32, #tpu.memory_space<vmem>>, vector<96x128xf32>
    tpu.vector_store %arg8[%c0_5, %c0_6], %5 {strides = array<i32>} : memref<96x128xf32, #tpu.memory_space<vmem>>, vector<96x128xf32>,
    %c0_7 = arith.constant 0 : index
    %c0_8 = arith.constant 0 : index
    %7 = vector.load %arg1[%c0_7, %c0_8] : memref<8x1xi32, #tpu.memory_space<vmem>>, vector<8x1xi32>
    %c0_9 = arith.constant 0 : index
    %c0_10 = arith.constant 0 : index
    %8 = vector.load %arg4[%c0_9, %c0_10] : memref<32x128xf32, #tpu.memory_space<vmem>>, vector<32x128xf32>
    %cst_11 = arith.constant 0.000000e+00 : f32
    %9 = vector.broadcast %cst_11 : f32 to vector<8x32xf32>
    %cst_12 = arith.constant 0.000000e+00 : f32
    %10 = vector.broadcast %cst_12 : f32 to vector<8x32xf32>
    %c0_i32 = arith.constant 0 : i32
    %c8_i32 = arith.constant 8 : i32
    %11 = arith.muli %c0_i32, %c8_i32 : i32
    %12 = tpu.assume_multiple %11, 8 : i32
    %13 = arith.index_cast %12 : i32 to index
    %c0_13 = arith.constant 0 : index
    %14 = vector.load %arg8[%13, %c0_13] : memref<96x128xf32, #tpu.memory_space<vmem>>, vector<8x128xf32>
    %cst_14 = arith.constant dense<0.000000e+00> : vector<8x128xf32>
    %15 = tpu.matmul %9, %8, %cst_14 {dimension_numbers = #tpu.dot_dimension_numbers<[1], [0], [0], [1], [0, 0, 1, 1], [], []>} : vector<8x32xf32>, vector<32x128xf32>, vector<8x128xf32> -> vector<8x128xf32>
    %16 = arith.addf %14, %15 : vector<8x128xf32>
    %17 = vector.extract_strided_slice %16 {offsets = [0, 0], sizes = [8, 32], strides = [1, 1]} : vector<8x128xf32> to vector<8x32xf32>
    %18 = arith.negf %17 : vector<8x32xf32>
    %19 = math.exp %18 : vector<8x32xf32>
    %cst_15 = arith.constant 1.000000e+00 : f32
    %20 = vector.broadcast %cst_15 : f32 to vector<8x32xf32>
    %21 = arith.addf %20, %19 : vector<8x32xf32>
    %22 = arith.divf %20, %21 : vector<8x32xf32>
    %23 = vector.extract_strided_slice %16 {offsets = [0, 32], sizes = [8, 32], strides = [1, 1]} : vector<8x128xf32> to vector<8x32xf32>
    %24 = arith.negf %23 : vector<8x32xf32>
    %25 = math.exp %24 : vector<8x32xf32>
    %cst_16 = arith.constant 1.000000e+00 : f32
    %26 = vector.broadcast %cst_16 : f32 to vector<8x32xf32>
    %27 = arith.addf %26, %25 : vector<8x32xf32>
    %28 = arith.divf %26, %27 : vector<8x32xf32>
    %29 = vector.extract_strided_slice %16 {offsets = [0, 64], sizes = [8, 32], strides = [1, 1]} : vector<8x128xf32> to vector<8x32xf32>
    %30 = math.tanh %29 : vector<8x32xf32>
    %31 = vector.extract_strided_slice %16 {offsets = [0, 96], sizes = [8, 32], strides = [1, 1]} : vector<8x128xf32> to vector<8x32xf32>
    %32 = arith.negf %31 : vector<8x32xf32>
    %33 = math.exp %32 : vector<8x32xf32>
    %cst_17 = arith.constant 1.000000e+00 : f32
    %34 = vector.broadcast %cst_17 : f32 to vector<8x32xf32>
    %35 = arith.addf %34, %33 : vector<8x32xf32>
    %36 = arith.divf %34, %35 : vector<8x32xf32>
    %37 = arith.mulf %28, %10 : vector<8x32xf32>
    %38 = arith.mulf %22, %30 : vector<8x32xf32>
    %39 = arith.addf %37, %38 : vector<8x32xf32>
    %40 = math.tanh %39 : vector<8x32xf32>
    %41 = arith.mulf %36, %40 : vector<8x32xf32>
    %42 = vector.broadcast %c0_i32 : i32 to vector<8x1xi32>
    %43 = arith.cmpi slt, %42, %7 : vector<8x1xi32>
    %44 = vector.shape_cast %43 : vector<8x1xi1> to vector<8x1xi1>
    %45 = vector.broadcast %44 : vector<8x1xi1> to vector<8x32xi1>
    %46 = arith.select %45, %39, %10 : vector<8x32xi1>, vector<8x32xf32>
    %47 = vector.shape_cast %43 : vector<8x1xi1> to vector<8x1xi1>
    %48 = vector.broadcast %47 : vector<8x1xi1> to vector<8x32xi1>
    %49 = arith.select %48, %41, %9 : vector<8x32xi1>, vector<8x32xf32>
    %cst_18 = arith.constant 0.000000e+00 : f32
    %50 = vector.shape_cast %43 : vector<8x1xi1> to vector<8x1xi1>
    %51 = vector.broadcast %50 : vector<8x1xi1> to vector<8x32xi1>
    %52 = vector.broadcast %cst_18 : f32 to vector<8x32xf32>
    %53 = arith.select %51, %41, %52 : vector<8x32xi1>, vector<8x32xf32>
    %54 = arith.index_cast %12 : i32 to index
    %c0_19 = arith.constant 0 : index
    %55 = vector.load %arg6[%54, %c0_19] : memref<96x32xf32, #tpu.memory_space<vmem>>, vector<8x32xf32>
    tpu.vector_store %arg6[%54, %c0_19], %53 {strides = array<i32>} : memref<96x32xf32, #tpu.memory_space<vmem>>, vector<8x32xf32>,
    %c1_i32 = arith.constant 1 : i32
    %c8_i32_20 = arith.constant 8 : i32
    %56 = arith.muli %c1_i32, %c8_i32_20 : i32
    %57 = tpu.assume_multiple %56, 8 : i32
    %58 = arith.index_cast %57 : i32 to index
    %c0_21 = arith.constant 0 : index
    %59 = vector.load %arg8[%58, %c0_21] : memref<96x128xf32, #tpu.memory_space<vmem>>, vector<8x128xf32>
    %cst_22 = arith.constant dense<0.000000e+00> : vector<8x128xf32>
    %60 = tpu.matmul %49, %8, %cst_22 {dimension_numbers = #tpu.dot_dimension_numbers<[1], [0], [0], [1], [0, 0, 1, 1], [], []>} : vector<8x32xf32>, vector<32x128xf32>, vector<8x128xf32> -> vector<8x128xf32>
    %61 = arith.addf %59, %60 : vector<8x128xf32>
    %62 = vector.extract_strided_slice %61 {offsets = [0, 0], sizes = [8, 32], strides = [1, 1]} : vector<8x128xf32> to vector<8x32xf32>
    %63 = arith.negf %62 : vector<8x32xf32>
    %64 = math.exp %63 : vector<8x32xf32>
    %cst_23 = arith.constant 1.000000e+00 : f32
    %65 = vector.broadcast %cst_23 : f32 to vector<8x32xf32>
    %66 = arith.addf %65, %64 : vector<8x32xf32>
    %67 = arith.divf %65, %66 : vector<8x32xf32>
    %68 = vector.extract_strided_slice %61 {offsets = [0, 32], sizes = [8, 32], strides = [1, 1]} : vector<8x128xf32> to vector<8x32xf32>
    %69 = arith.negf %68 : vector<8x32xf32>
    %70 = math.exp %69 : vector<8x32xf32>
    %cst_24 = arith.constant 1.000000e+00 : f32
    %71 = vector.broadcast %cst_24 : f32 to vector<8x32xf32>
    %72 = arith.addf %71, %70 : vector<8x32xf32>
    %73 = arith.divf %71, %72 : vector<8x32xf32>
    %74 = vector.extract_strided_slice %61 {offsets = [0, 64], sizes = [8, 32], strides = [1, 1]} : vector<8x128xf32> to vector<8x32xf32>
    %75 = math.tanh %74 : vector<8x32xf32>
    %76 = vector.extract_strided_slice %61 {offsets = [0, 96], sizes = [8, 32], strides = [1, 1]} : vector<8x128xf32> to vector<8x32xf32>
    %77 = arith.negf %76 : vector<8x32xf32>
    %78 = math.exp %77 : vector<8x32xf32>
    %cst_25 = arith.constant 1.000000e+00 : f32
    %79 = vector.broadcast %cst_25 : f32 to vector<8x32xf32>
    %80 = arith.addf %79, %78 : vector<8x32xf32>
    %81 = arith.divf %79, %80 : vector<8x32xf32>
    %82 = arith.mulf %73, %46 : vector<8x32xf32>
    %83 = arith.mulf %67, %75 : vector<8x32xf32>
    %84 = arith.addf %82, %83 : vector<8x32xf32>
    %85 = math.tanh %84 : vector<8x32xf32>
    %86 = arith.mulf %81, %85 : vector<8x32xf32>
    %87 = vector.broadcast %c1_i32 : i32 to vector<8x1xi32>
    %88 = arith.cmpi slt, %87, %7 : vector<8x1xi32>
    %89 = vector.shape_cast %88 : vector<8x1xi1> to vector<8x1xi1>
    %90 = vector.broadcast %89 : vector<8x1xi1> to vector<8x32xi1>
    %91 = arith.select %90, %84, %46 : vector<8x32xi1>, vector<8x32xf32>
    %92 = vector.shape_cast %88 : vector<8x1xi1> to vector<8x1xi1>
    %93 = vector.broadcast %92 : vector<8x1xi1> to vector<8x32xi1>
    %94 = arith.select %93, %86, %49 : vector<8x32xi1>, vector<8x32xf32>
    %cst_26 = arith.constant 0.000000e+00 : f32
    %95 = vector.shape_cast %88 : vector<8x1xi1> to vector<8x1xi1>
    %96 = vector.broadcast %95 : vector<8x1xi1> to vector<8x32xi1>
    %97 = vector.broadcast %cst_26 : f32 to vector<8x32xf32>
    %98 = arith.select %96, %86, %97 : vector<8x32xi1>, vector<8x32xf32>
    %99 = arith.index_cast %57 : i32 to index
    %c0_27 = arith.constant 0 : index
    %100 = vector.load %arg6[%99, %c0_27] : memref<96x32xf32, #tpu.memory_space<vmem>>, vector<8x32xf32>
    tpu.vector_store %arg6[%99, %c0_27], %98 {strides = array<i32>} : memref<96x32xf32, #tpu.memory_space<vmem>>, vector<8x32xf32>,
    %c2_i32 = arith.constant 2 : i32
    %c8_i32_28 = arith.constant 8 : i32
    %101 = arith.muli %c2_i32, %c8_i32_28 : i32
    %102 = tpu.assume_multiple %101, 8 : i32
    %103 = arith.index_cast %102 : i32 to index
    %c0_29 = arith.constant 0 : index
    %104 = vector.load %arg8[%103, %c0_29] : memref<96x128xf32, #tpu.memory_space<vmem>>, vector<8x128xf32>
    %cst_30 = arith.constant dense<0.000000e+00> : vector<8x128xf32>
    %105 = tpu.matmul %94, %8, %cst_30 {dimension_numbers = #tpu.dot_dimension_numbers<[1], [0], [0], [1], [0, 0, 1, 1], [], []>} : vector<8x32xf32>, vector<32x128xf32>, vector<8x128xf32> -> vector<8x128xf32>
    %106 = arith.addf %104, %105 : vector<8x128xf32>
    %107 = vector.extract_strided_slice %106 {offsets = [0, 0], sizes = [8, 32], strides = [1, 1]} : vector<8x128xf32> to vector<8x32xf32>
    %108 = arith.negf %107 : vector<8x32xf32>
    %109 = math.exp %108 : vector<8x32xf32>
    %cst_31 = arith.constant 1.000000e+00 : f32
    %110 = vector.broadcast %cst_31 : f32 to vector<8x32xf32>
    %111 = arith.addf %110, %109 : vector<8x32xf32>
    %112 = arith.divf %110, %111 : vector<8x32xf32>
    %113 = vector.extract_strided_slice %106 {offsets = [0, 32], sizes = [8, 32], strides = [1, 1]} : vector<8x128xf32> to vector<8x32xf32>
    %114 = arith.negf %113 : vector<8x32xf32>
    %115 = math.exp %114 : vector<8x32xf32>
    %cst_32 = arith.constant 1.000000e+00 : f32
    %116 = vector.broadcast %cst_32 : f32 to vector<8x32xf32>
    %117 = arith.addf %116, %115 : vector<8x32xf32>
    %118 = arith.divf %116, %117 : vector<8x32xf32>
    %119 = vector.extract_strided_slice %106 {offsets = [0, 64], sizes = [8, 32], strides = [1, 1]} : vector<8x128xf32> to vector<8x32xf32>
    %120 = math.tanh %119 : vector<8x32xf32>
    %121 = vector.extract_strided_slice %106 {offsets = [0, 96], sizes = [8, 32], strides = [1, 1]} : vector<8x128xf32> to vector<8x32xf32>
    %122 = arith.negf %121 : vector<8x32xf32>
    %123 = math.exp %122 : vector<8x32xf32>
    %cst_33 = arith.constant 1.000000e+00 : f32
    %124 = vector.broadcast %cst_33 : f32 to vector<8x32xf32>
    %125 = arith.addf %124, %123 : vector<8x32xf32>
    %126 = arith.divf %124, %125 : vector<8x32xf32>
    %127 = arith.mulf %118, %91 : vector<8x32xf32>
    %128 = arith.mulf %112, %120 : vector<8x32xf32>
    %129 = arith.addf %127, %128 : vector<8x32xf32>
    %130 = math.tanh %129 : vector<8x32xf32>
    %131 = arith.mulf %126, %130 : vector<8x32xf32>
    %132 = vector.broadcast %c2_i32 : i32 to vector<8x1xi32>
    %133 = arith.cmpi slt, %132, %7 : vector<8x1xi32>
    %134 = vector.shape_cast %133 : vector<8x1xi1> to vector<8x1xi1>
    %135 = vector.broadcast %134 : vector<8x1xi1> to vector<8x32xi1>
    %136 = arith.select %135, %129, %91 : vector<8x32xi1>, vector<8x32xf32>
    %137 = vector.shape_cast %133 : vector<8x1xi1> to vector<8x1xi1>
    %138 = vector.broadcast %137 : vector<8x1xi1> to vector<8x32xi1>
    %139 = arith.select %138, %131, %94 : vector<8x32xi1>, vector<8x32xf32>
    %cst_34 = arith.constant 0.000000e+00 : f32
    %140 = vector.shape_cast %133 : vector<8x1xi1> to vector<8x1xi1>
    %141 = vector.broadcast %140 : vector<8x1xi1> to vector<8x32xi1>
    %142 = vector.broadcast %cst_34 : f32 to vector<8x32xf32>
    %143 = arith.select %141, %131, %142 : vector<8x32xi1>, vector<8x32xf32>
    %144 = arith.index_cast %102 : i32 to index
    %c0_35 = arith.constant 0 : index
    %145 = vector.load %arg6[%144, %c0_35] : memref<96x32xf32, #tpu.memory_space<vmem>>, vector<8x32xf32>
    tpu.vector_store %arg6[%144, %c0_35], %143 {strides = array<i32>} : memref<96x32xf32, #tpu.memory_space<vmem>>, vector<8x32xf32>,
    %c3_i32 = arith.constant 3 : i32
    %c8_i32_36 = arith.constant 8 : i32
    %146 = arith.muli %c3_i32, %c8_i32_36 : i32
    %147 = tpu.assume_multiple %146, 8 : i32
    %148 = arith.index_cast %147 : i32 to index
    %c0_37 = arith.constant 0 : index
    %149 = vector.load %arg8[%148, %c0_37] : memref<96x128xf32, #tpu.memory_space<vmem>>, vector<8x128xf32>
    %cst_38 = arith.constant dense<0.000000e+00> : vector<8x128xf32>
    %150 = tpu.matmul %139, %8, %cst_38 {dimension_numbers = #tpu.dot_dimension_numbers<[1], [0], [0], [1], [0, 0, 1, 1], [], []>} : vector<8x32xf32>, vector<32x128xf32>, vector<8x128xf32> -> vector<8x128xf32>
    %151 = arith.addf %149, %150 : vector<8x128xf32>
    %152 = vector.extract_strided_slice %151 {offsets = [0, 0], sizes = [8, 32], strides = [1, 1]} : vector<8x128xf32> to vector<8x32xf32>
    %153 = arith.negf %152 : vector<8x32xf32>
    %154 = math.exp %153 : vector<8x32xf32>
    %cst_39 = arith.constant 1.000000e+00 : f32
    %155 = vector.broadcast %cst_39 : f32 to vector<8x32xf32>
    %156 = arith.addf %155, %154 : vector<8x32xf32>
    %157 = arith.divf %155, %156 : vector<8x32xf32>
    %158 = vector.extract_strided_slice %151 {offsets = [0, 32], sizes = [8, 32], strides = [1, 1]} : vector<8x128xf32> to vector<8x32xf32>
    %159 = arith.negf %158 : vector<8x32xf32>
    %160 = math.exp %159 : vector<8x32xf32>
    %cst_40 = arith.constant 1.000000e+00 : f32
    %161 = vector.broadcast %cst_40 : f32 to vector<8x32xf32>
    %162 = arith.addf %161, %160 : vector<8x32xf32>
    %163 = arith.divf %161, %162 : vector<8x32xf32>
    %164 = vector.extract_strided_slice %151 {offsets = [0, 64], sizes = [8, 32], strides = [1, 1]} : vector<8x128xf32> to vector<8x32xf32>
    %165 = math.tanh %164 : vector<8x32xf32>
    %166 = vector.extract_strided_slice %151 {offsets = [0, 96], sizes = [8, 32], strides = [1, 1]} : vector<8x128xf32> to vector<8x32xf32>
    %167 = arith.negf %166 : vector<8x32xf32>
    %168 = math.exp %167 : vector<8x32xf32>
    %cst_41 = arith.constant 1.000000e+00 : f32
    %169 = vector.broadcast %cst_41 : f32 to vector<8x32xf32>
    %170 = arith.addf %169, %168 : vector<8x32xf32>
    %171 = arith.divf %169, %170 : vector<8x32xf32>
    %172 = arith.mulf %163, %136 : vector<8x32xf32>
    %173 = arith.mulf %157, %165 : vector<8x32xf32>
    %174 = arith.addf %172, %173 : vector<8x32xf32>
    %175 = math.tanh %174 : vector<8x32xf32>
    %176 = arith.mulf %171, %175 : vector<8x32xf32>
    %177 = vector.broadcast %c3_i32 : i32 to vector<8x1xi32>
    %178 = arith.cmpi slt, %177, %7 : vector<8x1xi32>
    %179 = vector.shape_cast %178 : vector<8x1xi1> to vector<8x1xi1>
    %180 = vector.broadcast %179 : vector<8x1xi1> to vector<8x32xi1>
    %181 = arith.select %180, %174, %136 : vector<8x32xi1>, vector<8x32xf32>
    %182 = vector.shape_cast %178 : vector<8x1xi1> to vector<8x1xi1>
    %183 = vector.broadcast %182 : vector<8x1xi1> to vector<8x32xi1>
    %184 = arith.select %183, %176, %139 : vector<8x32xi1>, vector<8x32xf32>
    %cst_42 = arith.constant 0.000000e+00 : f32
    %185 = vector.shape_cast %178 : vector<8x1xi1> to vector<8x1xi1>
    %186 = vector.broadcast %185 : vector<8x1xi1> to vector<8x32xi1>
    %187 = vector.broadcast %cst_42 : f32 to vector<8x32xf32>
    %188 = arith.select %186, %176, %187 : vector<8x32xi1>, vector<8x32xf32>
    %189 = arith.index_cast %147 : i32 to index
    %c0_43 = arith.constant 0 : index
    %190 = vector.load %arg6[%189, %c0_43] : memref<96x32xf32, #tpu.memory_space<vmem>>, vector<8x32xf32>
    tpu.vector_store %arg6[%189, %c0_43], %188 {strides = array<i32>} : memref<96x32xf32, #tpu.memory_space<vmem>>, vector<8x32xf32>,
    %c4_i32 = arith.constant 4 : i32
    %c8_i32_44 = arith.constant 8 : i32
    %191 = arith.muli %c4_i32, %c8_i32_44 : i32
    %192 = tpu.assume_multiple %191, 8 : i32
    %193 = arith.index_cast %192 : i32 to index
    %c0_45 = arith.constant 0 : index
    %194 = vector.load %arg8[%193, %c0_45] : memref<96x128xf32, #tpu.memory_space<vmem>>, vector<8x128xf32>
    %cst_46 = arith.constant dense<0.000000e+00> : vector<8x128xf32>
    %195 = tpu.matmul %184, %8, %cst_46 {dimension_numbers = #tpu.dot_dimension_numbers<[1], [0], [0], [1], [0, 0, 1, 1], [], []>} : vector<8x32xf32>, vector<32x128xf32>, vector<8x128xf32> -> vector<8x128xf32>
    %196 = arith.addf %194, %195 : vector<8x128xf32>
    %197 = vector.extract_strided_slice %196 {offsets = [0, 0], sizes = [8, 32], strides = [1, 1]} : vector<8x128xf32> to vector<8x32xf32>
    %198 = arith.negf %197 : vector<8x32xf32>
    %199 = math.exp %198 : vector<8x32xf32>
    %cst_47 = arith.constant 1.000000e+00 : f32
    %200 = vector.broadcast %cst_47 : f32 to vector<8x32xf32>
    %201 = arith.addf %200, %199 : vector<8x32xf32>
    %202 = arith.divf %200, %201 : vector<8x32xf32>
    %203 = vector.extract_strided_slice %196 {offsets = [0, 32], sizes = [8, 32], strides = [1, 1]} : vector<8x128xf32> to vector<8x32xf32>
    %204 = arith.negf %203 : vector<8x32xf32>
    %205 = math.exp %204 : vector<8x32xf32>
    %cst_48 = arith.constant 1.000000e+00 : f32
    %206 = vector.broadcast %cst_48 : f32 to vector<8x32xf32>
    %207 = arith.addf %206, %205 : vector<8x32xf32>
    %208 = arith.divf %206, %207 : vector<8x32xf32>
    %209 = vector.extract_strided_slice %196 {offsets = [0, 64], sizes = [8, 32], strides = [1, 1]} : vector<8x128xf32> to vector<8x32xf32>
    %210 = math.tanh %209 : vector<8x32xf32>
    %211 = vector.extract_strided_slice %196 {offsets = [0, 96], sizes = [8, 32], strides = [1, 1]} : vector<8x128xf32> to vector<8x32xf32>
    %212 = arith.negf %211 : vector<8x32xf32>
    %213 = math.exp %212 : vector<8x32xf32>
    %cst_49 = arith.constant 1.000000e+00 : f32
    %214 = vector.broadcast %cst_49 : f32 to vector<8x32xf32>
    %215 = arith.addf %214, %213 : vector<8x32xf32>
    %216 = arith.divf %214, %215 : vector<8x32xf32>
    %217 = arith.mulf %208, %181 : vector<8x32xf32>
    %218 = arith.mulf %202, %210 : vector<8x32xf32>
    %219 = arith.addf %217, %218 : vector<8x32xf32>
    %220 = math.tanh %219 : vector<8x32xf32>
    %221 = arith.mulf %216, %220 : vector<8x32xf32>
    %222 = vector.broadcast %c4_i32 : i32 to vector<8x1xi32>
    %223 = arith.cmpi slt, %222, %7 : vector<8x1xi32>
    %224 = vector.shape_cast %223 : vector<8x1xi1> to vector<8x1xi1>
    %225 = vector.broadcast %224 : vector<8x1xi1> to vector<8x32xi1>
    %226 = arith.select %225, %219, %181 : vector<8x32xi1>, vector<8x32xf32>
    %227 = vector.shape_cast %223 : vector<8x1xi1> to vector<8x1xi1>
    %228 = vector.broadcast %227 : vector<8x1xi1> to vector<8x32xi1>
    %229 = arith.select %228, %221, %184 : vector<8x32xi1>, vector<8x32xf32>
    %cst_50 = arith.constant 0.000000e+00 : f32
    %230 = vector.shape_cast %223 : vector<8x1xi1> to vector<8x1xi1>
    %231 = vector.broadcast %230 : vector<8x1xi1> to vector<8x32xi1>
    %232 = vector.broadcast %cst_50 : f32 to vector<8x32xf32>
    %233 = arith.select %231, %221, %232 : vector<8x32xi1>, vector<8x32xf32>
    %234 = arith.index_cast %192 : i32 to index
    %c0_51 = arith.constant 0 : index
    %235 = vector.load %arg6[%234, %c0_51] : memref<96x32xf32, #tpu.memory_space<vmem>>, vector<8x32xf32>
    tpu.vector_store %arg6[%234, %c0_51], %233 {strides = array<i32>} : memref<96x32xf32, #tpu.memory_space<vmem>>, vector<8x32xf32>,
    %c5_i32 = arith.constant 5 : i32
    %c8_i32_52 = arith.constant 8 : i32
    %236 = arith.muli %c5_i32, %c8_i32_52 : i32
    %237 = tpu.assume_multiple %236, 8 : i32
    %238 = arith.index_cast %237 : i32 to index
    %c0_53 = arith.constant 0 : index
    %239 = vector.load %arg8[%238, %c0_53] : memref<96x128xf32, #tpu.memory_space<vmem>>, vector<8x128xf32>
    %cst_54 = arith.constant dense<0.000000e+00> : vector<8x128xf32>
    %240 = tpu.matmul %229, %8, %cst_54 {dimension_numbers = #tpu.dot_dimension_numbers<[1], [0], [0], [1], [0, 0, 1, 1], [], []>} : vector<8x32xf32>, vector<32x128xf32>, vector<8x128xf32> -> vector<8x128xf32>
    %241 = arith.addf %239, %240 : vector<8x128xf32>
    %242 = vector.extract_strided_slice %241 {offsets = [0, 0], sizes = [8, 32], strides = [1, 1]} : vector<8x128xf32> to vector<8x32xf32>
    %243 = arith.negf %242 : vector<8x32xf32>
    %244 = math.exp %243 : vector<8x32xf32>
    %cst_55 = arith.constant 1.000000e+00 : f32
    %245 = vector.broadcast %cst_55 : f32 to vector<8x32xf32>
    %246 = arith.addf %245, %244 : vector<8x32xf32>
    %247 = arith.divf %245, %246 : vector<8x32xf32>
    %248 = vector.extract_strided_slice %241 {offsets = [0, 32], sizes = [8, 32], strides = [1, 1]} : vector<8x128xf32> to vector<8x32xf32>
    %249 = arith.negf %248 : vector<8x32xf32>
    %250 = math.exp %249 : vector<8x32xf32>
    %cst_56 = arith.constant 1.000000e+00 : f32
    %251 = vector.broadcast %cst_56 : f32 to vector<8x32xf32>
    %252 = arith.addf %251, %250 : vector<8x32xf32>
    %253 = arith.divf %251, %252 : vector<8x32xf32>
    %254 = vector.extract_strided_slice %241 {offsets = [0, 64], sizes = [8, 32], strides = [1, 1]} : vector<8x128xf32> to vector<8x32xf32>
    %255 = math.tanh %254 : vector<8x32xf32>
    %256 = vector.extract_strided_slice %241 {offsets = [0, 96], sizes = [8, 32], strides = [1, 1]} : vector<8x128xf32> to vector<8x32xf32>
    %257 = arith.negf %256 : vector<8x32xf32>
    %258 = math.exp %257 : vector<8x32xf32>
    %cst_57 = arith.constant 1.000000e+00 : f32
    %259 = vector.broadcast %cst_57 : f32 to vector<8x32xf32>
    %260 = arith.addf %259, %258 : vector<8x32xf32>
    %261 = arith.divf %259, %260 : vector<8x32xf32>
    %262 = arith.mulf %253, %226 : vector<8x32xf32>
    %263 = arith.mulf %247, %255 : vector<8x32xf32>
    %264 = arith.addf %262, %263 : vector<8x32xf32>
    %265 = math.tanh %264 : vector<8x32xf32>
    %266 = arith.mulf %261, %265 : vector<8x32xf32>
    %267 = vector.broadcast %c5_i32 : i32 to vector<8x1xi32>
    %268 = arith.cmpi slt, %267, %7 : vector<8x1xi32>
    %269 = vector.shape_cast %268 : vector<8x1xi1> to vector<8x1xi1>
    %270 = vector.broadcast %269 : vector<8x1xi1> to vector<8x32xi1>
    %271 = arith.select %270, %264, %226 : vector<8x32xi1>, vector<8x32xf32>
    %272 = vector.shape_cast %268 : vector<8x1xi1> to vector<8x1xi1>
    %273 = vector.broadcast %272 : vector<8x1xi1> to vector<8x32xi1>
    %274 = arith.select %273, %266, %229 : vector<8x32xi1>, vector<8x32xf32>
    %cst_58 = arith.constant 0.000000e+00 : f32
    %275 = vector.shape_cast %268 : vector<8x1xi1> to vector<8x1xi1>
    %276 = vector.broadcast %275 : vector<8x1xi1> to vector<8x32xi1>
    %277 = vector.broadcast %cst_58 : f32 to vector<8x32xf32>
    %278 = arith.select %276, %266, %277 : vector<8x32xi1>, vector<8x32xf32>
    %279 = arith.index_cast %237 : i32 to index
    %c0_59 = arith.constant 0 : index
    %280 = vector.load %arg6[%279, %c0_59] : memref<96x32xf32, #tpu.memory_space<vmem>>, vector<8x32xf32>
    tpu.vector_store %arg6[%279, %c0_59], %278 {strides = array<i32>} : memref<96x32xf32, #tpu.memory_space<vmem>>, vector<8x32xf32>,
    %c6_i32 = arith.constant 6 : i32
    %c8_i32_60 = arith.constant 8 : i32
    %281 = arith.muli %c6_i32, %c8_i32_60 : i32
    %282 = tpu.assume_multiple %281, 8 : i32
    %283 = arith.index_cast %282 : i32 to index
    %c0_61 = arith.constant 0 : index
    %284 = vector.load %arg8[%283, %c0_61] : memref<96x128xf32, #tpu.memory_space<vmem>>, vector<8x128xf32>
    %cst_62 = arith.constant dense<0.000000e+00> : vector<8x128xf32>
    %285 = tpu.matmul %274, %8, %cst_62 {dimension_numbers = #tpu.dot_dimension_numbers<[1], [0], [0], [1], [0, 0, 1, 1], [], []>} : vector<8x32xf32>, vector<32x128xf32>, vector<8x128xf32> -> vector<8x128xf32>
    %286 = arith.addf %284, %285 : vector<8x128xf32>
    %287 = vector.extract_strided_slice %286 {offsets = [0, 0], sizes = [8, 32], strides = [1, 1]} : vector<8x128xf32> to vector<8x32xf32>
    %288 = arith.negf %287 : vector<8x32xf32>
    %289 = math.exp %288 : vector<8x32xf32>
    %cst_63 = arith.constant 1.000000e+00 : f32
    %290 = vector.broadcast %cst_63 : f32 to vector<8x32xf32>
    %291 = arith.addf %290, %289 : vector<8x32xf32>
    %292 = arith.divf %290, %291 : vector<8x32xf32>
    %293 = vector.extract_strided_slice %286 {offsets = [0, 32], sizes = [8, 32], strides = [1, 1]} : vector<8x128xf32> to vector<8x32xf32>
    %294 = arith.negf %293 : vector<8x32xf32>
    %295 = math.exp %294 : vector<8x32xf32>
    %cst_64 = arith.constant 1.000000e+00 : f32
    %296 = vector.broadcast %cst_64 : f32 to vector<8x32xf32>
    %297 = arith.addf %296, %295 : vector<8x32xf32>
    %298 = arith.divf %296, %297 : vector<8x32xf32>
    %299 = vector.extract_strided_slice %286 {offsets = [0, 64], sizes = [8, 32], strides = [1, 1]} : vector<8x128xf32> to vector<8x32xf32>
    %300 = math.tanh %299 : vector<8x32xf32>
    %301 = vector.extract_strided_slice %286 {offsets = [0, 96], sizes = [8, 32], strides = [1, 1]} : vector<8x128xf32> to vector<8x32xf32>
    %302 = arith.negf %301 : vector<8x32xf32>
    %303 = math.exp %302 : vector<8x32xf32>
    %cst_65 = arith.constant 1.000000e+00 : f32
    %304 = vector.broadcast %cst_65 : f32 to vector<8x32xf32>
    %305 = arith.addf %304, %303 : vector<8x32xf32>
    %306 = arith.divf %304, %305 : vector<8x32xf32>
    %307 = arith.mulf %298, %271 : vector<8x32xf32>
    %308 = arith.mulf %292, %300 : vector<8x32xf32>
    %309 = arith.addf %307, %308 : vector<8x32xf32>
    %310 = math.tanh %309 : vector<8x32xf32>
    %311 = arith.mulf %306, %310 : vector<8x32xf32>
    %312 = vector.broadcast %c6_i32 : i32 to vector<8x1xi32>
    %313 = arith.cmpi slt, %312, %7 : vector<8x1xi32>
    %314 = vector.shape_cast %313 : vector<8x1xi1> to vector<8x1xi1>
    %315 = vector.broadcast %314 : vector<8x1xi1> to vector<8x32xi1>
    %316 = arith.select %315, %309, %271 : vector<8x32xi1>, vector<8x32xf32>
    %317 = vector.shape_cast %313 : vector<8x1xi1> to vector<8x1xi1>
    %318 = vector.broadcast %317 : vector<8x1xi1> to vector<8x32xi1>
    %319 = arith.select %318, %311, %274 : vector<8x32xi1>, vector<8x32xf32>
    %cst_66 = arith.constant 0.000000e+00 : f32
    %320 = vector.shape_cast %313 : vector<8x1xi1> to vector<8x1xi1>
    %321 = vector.broadcast %320 : vector<8x1xi1> to vector<8x32xi1>
    %322 = vector.broadcast %cst_66 : f32 to vector<8x32xf32>
    %323 = arith.select %321, %311, %322 : vector<8x32xi1>, vector<8x32xf32>
    %324 = arith.index_cast %282 : i32 to index
    %c0_67 = arith.constant 0 : index
    %325 = vector.load %arg6[%324, %c0_67] : memref<96x32xf32, #tpu.memory_space<vmem>>, vector<8x32xf32>
    tpu.vector_store %arg6[%324, %c0_67], %323 {strides = array<i32>} : memref<96x32xf32, #tpu.memory_space<vmem>>, vector<8x32xf32>,
    %c7_i32 = arith.constant 7 : i32
    %c8_i32_68 = arith.constant 8 : i32
    %326 = arith.muli %c7_i32, %c8_i32_68 : i32
    %327 = tpu.assume_multiple %326, 8 : i32
    %328 = arith.index_cast %327 : i32 to index
    %c0_69 = arith.constant 0 : index
    %329 = vector.load %arg8[%328, %c0_69] : memref<96x128xf32, #tpu.memory_space<vmem>>, vector<8x128xf32>
    %cst_70 = arith.constant dense<0.000000e+00> : vector<8x128xf32>
    %330 = tpu.matmul %319, %8, %cst_70 {dimension_numbers = #tpu.dot_dimension_numbers<[1], [0], [0], [1], [0, 0, 1, 1], [], []>} : vector<8x32xf32>, vector<32x128xf32>, vector<8x128xf32> -> vector<8x128xf32>
    %331 = arith.addf %329, %330 : vector<8x128xf32>
    %332 = vector.extract_strided_slice %331 {offsets = [0, 0], sizes = [8, 32], strides = [1, 1]} : vector<8x128xf32> to vector<8x32xf32>
    %333 = arith.negf %332 : vector<8x32xf32>
    %334 = math.exp %333 : vector<8x32xf32>
    %cst_71 = arith.constant 1.000000e+00 : f32
    %335 = vector.broadcast %cst_71 : f32 to vector<8x32xf32>
    %336 = arith.addf %335, %334 : vector<8x32xf32>
    %337 = arith.divf %335, %336 : vector<8x32xf32>
    %338 = vector.extract_strided_slice %331 {offsets = [0, 32], sizes = [8, 32], strides = [1, 1]} : vector<8x128xf32> to vector<8x32xf32>
    %339 = arith.negf %338 : vector<8x32xf32>
    %340 = math.exp %339 : vector<8x32xf32>
    %cst_72 = arith.constant 1.000000e+00 : f32
    %341 = vector.broadcast %cst_72 : f32 to vector<8x32xf32>
    %342 = arith.addf %341, %340 : vector<8x32xf32>
    %343 = arith.divf %341, %342 : vector<8x32xf32>
    %344 = vector.extract_strided_slice %331 {offsets = [0, 64], sizes = [8, 32], strides = [1, 1]} : vector<8x128xf32> to vector<8x32xf32>
    %345 = math.tanh %344 : vector<8x32xf32>
    %346 = vector.extract_strided_slice %331 {offsets = [0, 96], sizes = [8, 32], strides = [1, 1]} : vector<8x128xf32> to vector<8x32xf32>
    %347 = arith.negf %346 : vector<8x32xf32>
    %348 = math.exp %347 : vector<8x32xf32>
    %cst_73 = arith.constant 1.000000e+00 : f32
    %349 = vector.broadcast %cst_73 : f32 to vector<8x32xf32>
    %350 = arith.addf %349, %348 : vector<8x32xf32>
    %351 = arith.divf %349, %350 : vector<8x32xf32>
    %352 = arith.mulf %343, %316 : vector<8x32xf32>
    %353 = arith.mulf %337, %345 : vector<8x32xf32>
    %354 = arith.addf %352, %353 : vector<8x32xf32>
    %355 = math.tanh %354 : vector<8x32xf32>
    %356 = arith.mulf %351, %355 : vector<8x32xf32>
    %357 = vector.broadcast %c7_i32 : i32 to vector<8x1xi32>
    %358 = arith.cmpi slt, %357, %7 : vector<8x1xi32>
    %359 = vector.shape_cast %358 : vector<8x1xi1> to vector<8x1xi1>
    %360 = vector.broadcast %359 : vector<8x1xi1> to vector<8x32xi1>
    %361 = arith.select %360, %354, %316 : vector<8x32xi1>, vector<8x32xf32>
    %362 = vector.shape_cast %358 : vector<8x1xi1> to vector<8x1xi1>
    %363 = vector.broadcast %362 : vector<8x1xi1> to vector<8x32xi1>
    %364 = arith.select %363, %356, %319 : vector<8x32xi1>, vector<8x32xf32>
    %cst_74 = arith.constant 0.000000e+00 : f32
    %365 = vector.shape_cast %358 : vector<8x1xi1> to vector<8x1xi1>
    %366 = vector.broadcast %365 : vector<8x1xi1> to vector<8x32xi1>
    %367 = vector.broadcast %cst_74 : f32 to vector<8x32xf32>
    %368 = arith.select %366, %356, %367 : vector<8x32xi1>, vector<8x32xf32>
    %369 = arith.index_cast %327 : i32 to index
    %c0_75 = arith.constant 0 : index
    %370 = vector.load %arg6[%369, %c0_75] : memref<96x32xf32, #tpu.memory_space<vmem>>, vector<8x32xf32>
    tpu.vector_store %arg6[%369, %c0_75], %368 {strides = array<i32>} : memref<96x32xf32, #tpu.memory_space<vmem>>, vector<8x32xf32>,
    %c8_i32_76 = arith.constant 8 : i32
    %c8_i32_77 = arith.constant 8 : i32
    %371 = arith.muli %c8_i32_76, %c8_i32_77 : i32
    %372 = tpu.assume_multiple %371, 8 : i32
    %373 = arith.index_cast %372 : i32 to index
    %c0_78 = arith.constant 0 : index
    %374 = vector.load %arg8[%373, %c0_78] : memref<96x128xf32, #tpu.memory_space<vmem>>, vector<8x128xf32>
    %cst_79 = arith.constant dense<0.000000e+00> : vector<8x128xf32>
    %375 = tpu.matmul %364, %8, %cst_79 {dimension_numbers = #tpu.dot_dimension_numbers<[1], [0], [0], [1], [0, 0, 1, 1], [], []>} : vector<8x32xf32>, vector<32x128xf32>, vector<8x128xf32> -> vector<8x128xf32>
    %376 = arith.addf %374, %375 : vector<8x128xf32>
    %377 = vector.extract_strided_slice %376 {offsets = [0, 0], sizes = [8, 32], strides = [1, 1]} : vector<8x128xf32> to vector<8x32xf32>
    %378 = arith.negf %377 : vector<8x32xf32>
    %379 = math.exp %378 : vector<8x32xf32>
    %cst_80 = arith.constant 1.000000e+00 : f32
    %380 = vector.broadcast %cst_80 : f32 to vector<8x32xf32>
    %381 = arith.addf %380, %379 : vector<8x32xf32>
    %382 = arith.divf %380, %381 : vector<8x32xf32>
    %383 = vector.extract_strided_slice %376 {offsets = [0, 32], sizes = [8, 32], strides = [1, 1]} : vector<8x128xf32> to vector<8x32xf32>
    %384 = arith.negf %383 : vector<8x32xf32>
    %385 = math.exp %384 : vector<8x32xf32>
    %cst_81 = arith.constant 1.000000e+00 : f32
    %386 = vector.broadcast %cst_81 : f32 to vector<8x32xf32>
    %387 = arith.addf %386, %385 : vector<8x32xf32>
    %388 = arith.divf %386, %387 : vector<8x32xf32>
    %389 = vector.extract_strided_slice %376 {offsets = [0, 64], sizes = [8, 32], strides = [1, 1]} : vector<8x128xf32> to vector<8x32xf32>
    %390 = math.tanh %389 : vector<8x32xf32>
    %391 = vector.extract_strided_slice %376 {offsets = [0, 96], sizes = [8, 32], strides = [1, 1]} : vector<8x128xf32> to vector<8x32xf32>
    %392 = arith.negf %391 : vector<8x32xf32>
    %393 = math.exp %392 : vector<8x32xf32>
    %cst_82 = arith.constant 1.000000e+00 : f32
    %394 = vector.broadcast %cst_82 : f32 to vector<8x32xf32>
    %395 = arith.addf %394, %393 : vector<8x32xf32>
    %396 = arith.divf %394, %395 : vector<8x32xf32>
    %397 = arith.mulf %388, %361 : vector<8x32xf32>
    %398 = arith.mulf %382, %390 : vector<8x32xf32>
    %399 = arith.addf %397, %398 : vector<8x32xf32>
    %400 = math.tanh %399 : vector<8x32xf32>
    %401 = arith.mulf %396, %400 : vector<8x32xf32>
    %402 = vector.broadcast %c8_i32_76 : i32 to vector<8x1xi32>
    %403 = arith.cmpi slt, %402, %7 : vector<8x1xi32>
    %404 = vector.shape_cast %403 : vector<8x1xi1> to vector<8x1xi1>
    %405 = vector.broadcast %404 : vector<8x1xi1> to vector<8x32xi1>
    %406 = arith.select %405, %399, %361 : vector<8x32xi1>, vector<8x32xf32>
    %407 = vector.shape_cast %403 : vector<8x1xi1> to vector<8x1xi1>
    %408 = vector.broadcast %407 : vector<8x1xi1> to vector<8x32xi1>
    %409 = arith.select %408, %401, %364 : vector<8x32xi1>, vector<8x32xf32>
    %cst_83 = arith.constant 0.000000e+00 : f32
    %410 = vector.shape_cast %403 : vector<8x1xi1> to vector<8x1xi1>
    %411 = vector.broadcast %410 : vector<8x1xi1> to vector<8x32xi1>
    %412 = vector.broadcast %cst_83 : f32 to vector<8x32xf32>
    %413 = arith.select %411, %401, %412 : vector<8x32xi1>, vector<8x32xf32>
    %414 = arith.index_cast %372 : i32 to index
    %c0_84 = arith.constant 0 : index
    %415 = vector.load %arg6[%414, %c0_84] : memref<96x32xf32, #tpu.memory_space<vmem>>, vector<8x32xf32>
    tpu.vector_store %arg6[%414, %c0_84], %413 {strides = array<i32>} : memref<96x32xf32, #tpu.memory_space<vmem>>, vector<8x32xf32>,
    %c9_i32 = arith.constant 9 : i32
    %c8_i32_85 = arith.constant 8 : i32
    %416 = arith.muli %c9_i32, %c8_i32_85 : i32
    %417 = tpu.assume_multiple %416, 8 : i32
    %418 = arith.index_cast %417 : i32 to index
    %c0_86 = arith.constant 0 : index
    %419 = vector.load %arg8[%418, %c0_86] : memref<96x128xf32, #tpu.memory_space<vmem>>, vector<8x128xf32>
    %cst_87 = arith.constant dense<0.000000e+00> : vector<8x128xf32>
    %420 = tpu.matmul %409, %8, %cst_87 {dimension_numbers = #tpu.dot_dimension_numbers<[1], [0], [0], [1], [0, 0, 1, 1], [], []>} : vector<8x32xf32>, vector<32x128xf32>, vector<8x128xf32> -> vector<8x128xf32>
    %421 = arith.addf %419, %420 : vector<8x128xf32>
    %422 = vector.extract_strided_slice %421 {offsets = [0, 0], sizes = [8, 32], strides = [1, 1]} : vector<8x128xf32> to vector<8x32xf32>
    %423 = arith.negf %422 : vector<8x32xf32>
    %424 = math.exp %423 : vector<8x32xf32>
    %cst_88 = arith.constant 1.000000e+00 : f32
    %425 = vector.broadcast %cst_88 : f32 to vector<8x32xf32>
    %426 = arith.addf %425, %424 : vector<8x32xf32>
    %427 = arith.divf %425, %426 : vector<8x32xf32>
    %428 = vector.extract_strided_slice %421 {offsets = [0, 32], sizes = [8, 32], strides = [1, 1]} : vector<8x128xf32> to vector<8x32xf32>
    %429 = arith.negf %428 : vector<8x32xf32>
    %430 = math.exp %429 : vector<8x32xf32>
    %cst_89 = arith.constant 1.000000e+00 : f32
    %431 = vector.broadcast %cst_89 : f32 to vector<8x32xf32>
    %432 = arith.addf %431, %430 : vector<8x32xf32>
    %433 = arith.divf %431, %432 : vector<8x32xf32>
    %434 = vector.extract_strided_slice %421 {offsets = [0, 64], sizes = [8, 32], strides = [1, 1]} : vector<8x128xf32> to vector<8x32xf32>
    %435 = math.tanh %434 : vector<8x32xf32>
    %436 = vector.extract_strided_slice %421 {offsets = [0, 96], sizes = [8, 32], strides = [1, 1]} : vector<8x128xf32> to vector<8x32xf32>
    %437 = arith.negf %436 : vector<8x32xf32>
    %438 = math.exp %437 : vector<8x32xf32>
    %cst_90 = arith.constant 1.000000e+00 : f32
    %439 = vector.broadcast %cst_90 : f32 to vector<8x32xf32>
    %440 = arith.addf %439, %438 : vector<8x32xf32>
    %441 = arith.divf %439, %440 : vector<8x32xf32>
    %442 = arith.mulf %433, %406 : vector<8x32xf32>
    %443 = arith.mulf %427, %435 : vector<8x32xf32>
    %444 = arith.addf %442, %443 : vector<8x32xf32>
    %445 = math.tanh %444 : vector<8x32xf32>
    %446 = arith.mulf %441, %445 : vector<8x32xf32>
    %447 = vector.broadcast %c9_i32 : i32 to vector<8x1xi32>
    %448 = arith.cmpi slt, %447, %7 : vector<8x1xi32>
    %449 = vector.shape_cast %448 : vector<8x1xi1> to vector<8x1xi1>
    %450 = vector.broadcast %449 : vector<8x1xi1> to vector<8x32xi1>
    %451 = arith.select %450, %444, %406 : vector<8x32xi1>, vector<8x32xf32>
    %452 = vector.shape_cast %448 : vector<8x1xi1> to vector<8x1xi1>
    %453 = vector.broadcast %452 : vector<8x1xi1> to vector<8x32xi1>
    %454 = arith.select %453, %446, %409 : vector<8x32xi1>, vector<8x32xf32>
    %cst_91 = arith.constant 0.000000e+00 : f32
    %455 = vector.shape_cast %448 : vector<8x1xi1> to vector<8x1xi1>
    %456 = vector.broadcast %455 : vector<8x1xi1> to vector<8x32xi1>
    %457 = vector.broadcast %cst_91 : f32 to vector<8x32xf32>
    %458 = arith.select %456, %446, %457 : vector<8x32xi1>, vector<8x32xf32>
    %459 = arith.index_cast %417 : i32 to index
    %c0_92 = arith.constant 0 : index
    %460 = vector.load %arg6[%459, %c0_92] : memref<96x32xf32, #tpu.memory_space<vmem>>, vector<8x32xf32>
    tpu.vector_store %arg6[%459, %c0_92], %458 {strides = array<i32>} : memref<96x32xf32, #tpu.memory_space<vmem>>, vector<8x32xf32>,
    %c10_i32 = arith.constant 10 : i32
    %c8_i32_93 = arith.constant 8 : i32
    %461 = arith.muli %c10_i32, %c8_i32_93 : i32
    %462 = tpu.assume_multiple %461, 8 : i32
    %463 = arith.index_cast %462 : i32 to index
    %c0_94 = arith.constant 0 : index
    %464 = vector.load %arg8[%463, %c0_94] : memref<96x128xf32, #tpu.memory_space<vmem>>, vector<8x128xf32>
    %cst_95 = arith.constant dense<0.000000e+00> : vector<8x128xf32>
    %465 = tpu.matmul %454, %8, %cst_95 {dimension_numbers = #tpu.dot_dimension_numbers<[1], [0], [0], [1], [0, 0, 1, 1], [], []>} : vector<8x32xf32>, vector<32x128xf32>, vector<8x128xf32> -> vector<8x128xf32>
    %466 = arith.addf %464, %465 : vector<8x128xf32>
    %467 = vector.extract_strided_slice %466 {offsets = [0, 0], sizes = [8, 32], strides = [1, 1]} : vector<8x128xf32> to vector<8x32xf32>
    %468 = arith.negf %467 : vector<8x32xf32>
    %469 = math.exp %468 : vector<8x32xf32>
    %cst_96 = arith.constant 1.000000e+00 : f32
    %470 = vector.broadcast %cst_96 : f32 to vector<8x32xf32>
    %471 = arith.addf %470, %469 : vector<8x32xf32>
    %472 = arith.divf %470, %471 : vector<8x32xf32>
    %473 = vector.extract_strided_slice %466 {offsets = [0, 32], sizes = [8, 32], strides = [1, 1]} : vector<8x128xf32> to vector<8x32xf32>
    %474 = arith.negf %473 : vector<8x32xf32>
    %475 = math.exp %474 : vector<8x32xf32>
    %cst_97 = arith.constant 1.000000e+00 : f32
    %476 = vector.broadcast %cst_97 : f32 to vector<8x32xf32>
    %477 = arith.addf %476, %475 : vector<8x32xf32>
    %478 = arith.divf %476, %477 : vector<8x32xf32>
    %479 = vector.extract_strided_slice %466 {offsets = [0, 64], sizes = [8, 32], strides = [1, 1]} : vector<8x128xf32> to vector<8x32xf32>
    %480 = math.tanh %479 : vector<8x32xf32>
    %481 = vector.extract_strided_slice %466 {offsets = [0, 96], sizes = [8, 32], strides = [1, 1]} : vector<8x128xf32> to vector<8x32xf32>
    %482 = arith.negf %481 : vector<8x32xf32>
    %483 = math.exp %482 : vector<8x32xf32>
    %cst_98 = arith.constant 1.000000e+00 : f32
    %484 = vector.broadcast %cst_98 : f32 to vector<8x32xf32>
    %485 = arith.addf %484, %483 : vector<8x32xf32>
    %486 = arith.divf %484, %485 : vector<8x32xf32>
    %487 = arith.mulf %478, %451 : vector<8x32xf32>
    %488 = arith.mulf %472, %480 : vector<8x32xf32>
    %489 = arith.addf %487, %488 : vector<8x32xf32>
    %490 = math.tanh %489 : vector<8x32xf32>
    %491 = arith.mulf %486, %490 : vector<8x32xf32>
    %492 = vector.broadcast %c10_i32 : i32 to vector<8x1xi32>
    %493 = arith.cmpi slt, %492, %7 : vector<8x1xi32>
    %494 = vector.shape_cast %493 : vector<8x1xi1> to vector<8x1xi1>
    %495 = vector.broadcast %494 : vector<8x1xi1> to vector<8x32xi1>
    %496 = arith.select %495, %489, %451 : vector<8x32xi1>, vector<8x32xf32>
    %497 = vector.shape_cast %493 : vector<8x1xi1> to vector<8x1xi1>
    %498 = vector.broadcast %497 : vector<8x1xi1> to vector<8x32xi1>
    %499 = arith.select %498, %491, %454 : vector<8x32xi1>, vector<8x32xf32>
    %cst_99 = arith.constant 0.000000e+00 : f32
    %500 = vector.shape_cast %493 : vector<8x1xi1> to vector<8x1xi1>
    %501 = vector.broadcast %500 : vector<8x1xi1> to vector<8x32xi1>
    %502 = vector.broadcast %cst_99 : f32 to vector<8x32xf32>
    %503 = arith.select %501, %491, %502 : vector<8x32xi1>, vector<8x32xf32>
    %504 = arith.index_cast %462 : i32 to index
    %c0_100 = arith.constant 0 : index
    %505 = vector.load %arg6[%504, %c0_100] : memref<96x32xf32, #tpu.memory_space<vmem>>, vector<8x32xf32>
    tpu.vector_store %arg6[%504, %c0_100], %503 {strides = array<i32>} : memref<96x32xf32, #tpu.memory_space<vmem>>, vector<8x32xf32>,
    %c11_i32 = arith.constant 11 : i32
    %c8_i32_101 = arith.constant 8 : i32
    %506 = arith.muli %c11_i32, %c8_i32_101 : i32
    %507 = tpu.assume_multiple %506, 8 : i32
    %508 = arith.index_cast %507 : i32 to index
    %c0_102 = arith.constant 0 : index
    %509 = vector.load %arg8[%508, %c0_102] : memref<96x128xf32, #tpu.memory_space<vmem>>, vector<8x128xf32>
    %cst_103 = arith.constant dense<0.000000e+00> : vector<8x128xf32>
    %510 = tpu.matmul %499, %8, %cst_103 {dimension_numbers = #tpu.dot_dimension_numbers<[1], [0], [0], [1], [0, 0, 1, 1], [], []>} : vector<8x32xf32>, vector<32x128xf32>, vector<8x128xf32> -> vector<8x128xf32>
    %511 = arith.addf %509, %510 : vector<8x128xf32>
    %512 = vector.extract_strided_slice %511 {offsets = [0, 0], sizes = [8, 32], strides = [1, 1]} : vector<8x128xf32> to vector<8x32xf32>
    %513 = arith.negf %512 : vector<8x32xf32>
    %514 = math.exp %513 : vector<8x32xf32>
    %cst_104 = arith.constant 1.000000e+00 : f32
    %515 = vector.broadcast %cst_104 : f32 to vector<8x32xf32>
    %516 = arith.addf %515, %514 : vector<8x32xf32>
    %517 = arith.divf %515, %516 : vector<8x32xf32>
    %518 = vector.extract_strided_slice %511 {offsets = [0, 32], sizes = [8, 32], strides = [1, 1]} : vector<8x128xf32> to vector<8x32xf32>
    %519 = arith.negf %518 : vector<8x32xf32>
    %520 = math.exp %519 : vector<8x32xf32>
    %cst_105 = arith.constant 1.000000e+00 : f32
    %521 = vector.broadcast %cst_105 : f32 to vector<8x32xf32>
    %522 = arith.addf %521, %520 : vector<8x32xf32>
    %523 = arith.divf %521, %522 : vector<8x32xf32>
    %524 = vector.extract_strided_slice %511 {offsets = [0, 64], sizes = [8, 32], strides = [1, 1]} : vector<8x128xf32> to vector<8x32xf32>
    %525 = math.tanh %524 : vector<8x32xf32>
    %526 = vector.extract_strided_slice %511 {offsets = [0, 96], sizes = [8, 32], strides = [1, 1]} : vector<8x128xf32> to vector<8x32xf32>
    %527 = arith.negf %526 : vector<8x32xf32>
    %528 = math.exp %527 : vector<8x32xf32>
    %cst_106 = arith.constant 1.000000e+00 : f32
    %529 = vector.broadcast %cst_106 : f32 to vector<8x32xf32>
    %530 = arith.addf %529, %528 : vector<8x32xf32>
    %531 = arith.divf %529, %530 : vector<8x32xf32>
    %532 = arith.mulf %523, %496 : vector<8x32xf32>
    %533 = arith.mulf %517, %525 : vector<8x32xf32>
    %534 = arith.addf %532, %533 : vector<8x32xf32>
    %535 = math.tanh %534 : vector<8x32xf32>
    %536 = arith.mulf %531, %535 : vector<8x32xf32>
    %537 = vector.broadcast %c11_i32 : i32 to vector<8x1xi32>
    %538 = arith.cmpi slt, %537, %7 : vector<8x1xi32>
    %539 = vector.shape_cast %538 : vector<8x1xi1> to vector<8x1xi1>
    %540 = vector.broadcast %539 : vector<8x1xi1> to vector<8x32xi1>
    %541 = arith.select %540, %534, %496 : vector<8x32xi1>, vector<8x32xf32>
    %542 = vector.shape_cast %538 : vector<8x1xi1> to vector<8x1xi1>
    %543 = vector.broadcast %542 : vector<8x1xi1> to vector<8x32xi1>
    %544 = arith.select %543, %536, %499 : vector<8x32xi1>, vector<8x32xf32>
    %cst_107 = arith.constant 0.000000e+00 : f32
    %545 = vector.shape_cast %538 : vector<8x1xi1> to vector<8x1xi1>
    %546 = vector.broadcast %545 : vector<8x1xi1> to vector<8x32xi1>
    %547 = vector.broadcast %cst_107 : f32 to vector<8x32xf32>
    %548 = arith.select %546, %536, %547 : vector<8x32xi1>, vector<8x32xf32>
    %549 = arith.index_cast %507 : i32 to index
    %c0_108 = arith.constant 0 : index
    %550 = vector.load %arg6[%549, %c0_108] : memref<96x32xf32, #tpu.memory_space<vmem>>, vector<8x32xf32>
    tpu.vector_store %arg6[%549, %c0_108], %548 {strides = array<i32>} : memref<96x32xf32, #tpu.memory_space<vmem>>, vector<8x32xf32>,
    %c12_i32 = arith.constant 12 : i32
    %c0_109 = arith.constant 0 : index
    %c0_110 = arith.constant 0 : index
    %551 = vector.load %arg7[%c0_109, %c0_110] : memref<8x32xf32, #tpu.memory_space<vmem>>, vector<8x32xf32>
    tpu.vector_store %arg7[%c0_109, %c0_110], %544 {strides = array<i32>} : memref<8x32xf32, #tpu.memory_space<vmem>>, vector<8x32xf32>,
    return
  }
  func.func @transform_0(%arg0: i32) -> (i32, i32) {
    %c0_i32 = arith.constant 0 : i32
    %c0_i32_0 = arith.constant 0 : i32
    %c0_i32_1 = arith.constant 0 : i32
    return %c0_i32, %c0_i32_0 : i32, i32
  }
  func.func @transform_1(%arg0: i32) -> (i32, i32) {
    %c0_i32 = arith.constant 0 : i32
    %c0_i32_0 = arith.constant 0 : i32
    %c0_i32_1 = arith.constant 0 : i32
    return %c0_i32, %c0_i32_0 : i32, i32
  }
  func.func @transform_2(%arg0: i32) -> (i32, i32) {
    %c0_i32 = arith.constant 0 : i32
    %c0_i32_0 = arith.constant 0 : i32
    %c0_i32_1 = arith.constant 0 : i32
    return %c0_i32, %c0_i32_0 : i32, i32
  }
  func.func @transform_3(%arg0: i32) -> (i32, i32) {
    %c0_i32 = arith.constant 0 : i32
    %c0_i32_0 = arith.constant 0 : i32
    %c0_i32_1 = arith.constant 0 : i32
    return %c0_i32, %c0_i32_0 : i32, i32
  }
  func.func @transform_4(%arg0: i32) -> (i32, i32) {
    %c0_i32 = arith.constant 0 : i32
    %c0_i32_0 = arith.constant 0 : i32
    %c0_i32_1 = arith.constant 0 : i32
    return %c0_i32, %c0_i32_0 : i32, i32
  }
  func.func @transform_5(%arg0: i32) -> (i32, i32) {
    %c0_i32 = arith.constant 0 : i32
    %c0_i32_0 = arith.constant 0 : i32
    %c0_i32_1 = arith.constant 0 : i32
    return %c0_i32, %c0_i32_0 : i32, i32
  }
  func.func @transform_6(%arg0: i32) -> (i32, i32) {
    %c0_i32 = arith.constant 0 : i32
    %c0_i32_0 = arith.constant 0 : i32
    %c0_i32_1 = arith.constant 0 : i32
    return %c0_i32, %c0_i32_0 : i32, i32
  }
}

</mosaic_0001>

<llo_original>
// kernel: tpu_custom_call.1
$region0: #{tpu_custom_call.1}
  #allocation0 [shape = 'u32[]', space=smem, size = 0x4, offset = 0x4, fixed_abs, tag = 'smem constant byte address 0x4 - core index']
  #allocation1 [shape = 'u32[144,128]{1,0:T(1,128)}', space=vmem, size = 0x12000, scoped, tag = 'internal scratch']
  #allocation2 [shape = 'f32[96,128]{1,0:T(8,128)}', space=vmem, size = 0xc000, scoped, tag = 'scratch operand']
  %s0 = inlined_call_operand.vmem [shape: s32[8,1], index: 0, kind: input, shape index: {}]
  %s1 = inlined_call_operand.vmem [shape: f32[96,16], index: 1, kind: input, shape index: {}]
  %s2 = inlined_call_operand.vmem [shape: f32[16,128], index: 2, kind: input, shape index: {}]
  %s3 = inlined_call_operand.vmem [shape: f32[32,128], index: 3, kind: input, shape index: {}]
  %s4 = inlined_call_operand.vmem [shape: f32[1,128], index: 4, kind: input, shape index: {}]
  %s5 = inlined_call_operand.vmem [shape: f32[96,32], index: 5, kind: output, shape index: {0}]
  %s6 = inlined_call_operand.hbm [shape: f32[8,32], index: 6, kind: output, shape index: {1}]
  %7 = xla_tuple %s5, %s6
  %s8 = sld [smem:[#allocation0]]
  $region38: #{tpu_custom_call.1} parent=0
    _
  %s10 = ssub.s32 1, %s8
  %s11 = scalar_select 0, %s10, %s8
  $region1: #{tpu_custom_call.1} parent=0
    #allocation3 [shape = 'u8[4096]{0}', space=vmem, size = 0x1000, scoped, tag = 'output window, operand 1, single buffered']
    #allocation4 [shape = 's32[1]{0}', space=sflag, size = 0x4, scoped, tag = 'scoped memory for tpu_custom_call.1']
    %12 = vsyncpa [#allocation4], 0
    // Predicated region
    $region2: #{tpu_custom_call.1} parent=1 // pred_check
      _
    $region3: #{tpu_custom_call.1} parent=1 // pred_check_branch
      %14 = sbr.rel (0) target = $region5
    $region4: #{tpu_custom_call.1} parent=1 // pred_region
      _
    $region5: #{tpu_custom_call.1} parent=1 // pred_fallthru
      _
    // Predicated region
    $region6: #{tpu_custom_call.1} parent=1 // pred_check
      _
    $region7: #{tpu_custom_call.1} parent=1 // pred_check_branch
      %16 = sbr.rel (0) target = $region9
    $region8: #{tpu_custom_call.1} parent=1 // pred_region
      _
    $region9: #{tpu_custom_call.1} parent=1 // pred_fallthru
      _
    // Predicated region
    $region10: #{tpu_custom_call.1} parent=1 // pred_check
      _
    $region11: #{tpu_custom_call.1} parent=1 // pred_check_branch
      %18 = sbr.rel (0) target = $region13
    $region12: #{tpu_custom_call.1} parent=1 // pred_region
      _
    $region13: #{tpu_custom_call.1} parent=1 // pred_fallthru
      _
    // Predicated region
    $region14: #{tpu_custom_call.1} parent=1 // pred_check
      _
    $region15: #{tpu_custom_call.1} parent=1 // pred_check_branch
      %20 = sbr.rel (0) target = $region17
    $region16: #{tpu_custom_call.1} parent=1 // pred_region
      _
    $region17: #{tpu_custom_call.1} parent=1 // pred_fallthru
      _
    // Predicated region
    $region18: #{tpu_custom_call.1} parent=1 // pred_check
      _
    $region19: #{tpu_custom_call.1} parent=1 // pred_check_branch
      %22 = sbr.rel (0) target = $region21
    $region20: #{tpu_custom_call.1} parent=1 // pred_region
      _
    $region21: #{tpu_custom_call.1} parent=1 // pred_fallthru
      _
    %v23 = vld [vmem:[%s1] sm:$0xff]
    %v24 = vld [vmem:[%s1 + $0x8] sm:$0xff]
    %v25 = vld [vmem:[%s1 + $0x10] sm:$0xff]
    %v26 = vld [vmem:[%s1 + $0x18] sm:$0xff]
    %v27 = vld [vmem:[%s1 + $0x20] sm:$0xff]
    %v28 = vld [vmem:[%s1 + $0x28] sm:$0xff]
    %v29 = vld [vmem:[%s1 + $0x30] sm:$0xff]
    %v30 = vld [vmem:[%s1 + $0x38] sm:$0xff]
    %v31 = vld [vmem:[%s1 + $0x40] sm:$0xff]
    %v32 = vld [vmem:[%s1 + $0x48] sm:$0xff]
    %v33 = vld [vmem:[%s1 + $0x50] sm:$0xff]
    %v34 = vld [vmem:[%s1 + $0x58] sm:$0xff]
    %v35 = vld [vmem:[%s2] sm:$0xff]
    %v36 = vld [vmem:[%s2 + $0x8] sm:$0xff]
    %v37 = vld [vmem:[%s4] sm:$0x1]
    %v39 = vlaneseq
    %v40 = vshrl.u32 %v39, 7
    %v41 = vsub.s32 0, %v40
    %v42 = vrot.slane %v37, %v41
    %vm44 = vcmask 130048
    %v46 = vsel %vm44, %v23, 0
    %v49 = vsel %vm44, %v24, 0
    %v52 = vsel %vm44, %v25, 0
    %v55 = vsel %vm44, %v26, 0
    %v58 = vsel %vm44, %v27, 0
    %v61 = vsel %vm44, %v28, 0
    %v64 = vsel %vm44, %v29, 0
    %v67 = vsel %vm44, %v30, 0
    %v70 = vsel %vm44, %v31, 0
    %v73 = vsel %vm44, %v32, 0
    %v76 = vsel %vm44, %v33, 0
    %v79 = vsel %vm44, %v34, 0
    %81 = vmatprep.subr.mxu0 0.0
    %82 = vmatpush1.msra.mxu0 %v35
    %83 = vmatprep.subr.mxu0 0.0
    %84 = vmatpush1.msra.mxu0 %v36
    %85 = vmatprep.subr.mxu0 0.0
    %86 = vmatpush1.msra.mxu0 0.0
    %87 = vmatprep.subr.mxu0 0.0
    %88 = vmatpush1.msra.mxu0 0.0
    %89 = vmatprep.subr.mxu0 0.0
    %90 = vmatpush1.msra.mxu0 0.0
    %91 = vmatprep.subr.mxu0 0.0
    %92 = vmatpush1.msra.mxu0 0.0
    %93 = vmatprep.subr.mxu0 0.0
    %94 = vmatpush1.msra.mxu0 0.0
    %95 = vmatprep.subr.mxu0 0.0
    %96 = vmatpush1.msra.mxu0 0.0
    %97 = vmatprep.subr.mxu0 0.0
    %98 = vmatpush1.msra.mxu0 0.0
    %99 = vmatprep.subr.mxu0 0.0
    %100 = vmatpush1.msra.mxu0 0.0
    %101 = vmatprep.subr.mxu0 0.0
    %102 = vmatpush1.msra.mxu0 0.0
    %103 = vmatprep.subr.mxu0 0.0
    %104 = vmatpush1.msra.mxu0 0.0
    %105 = vmatprep.subr.mxu0 0.0
    %106 = vmatpush1.msra.mxu0 0.0
    %107 = vmatprep.subr.mxu0 0.0
    %108 = vmatpush1.msra.mxu0 0.0
    %109 = vmatprep.subr.mxu0 0.0
    %110 = vmatpush1.msra.mxu0 0.0
    %111 = vmatprep.subr.mxu0 0.0
    %112 = vmatpush1.msra.mxu0 0.0
    %113 = vmatprep.subr.mxu0 0.0
    %114 = vmatpush1.msra.mxu0 0.0
    %115 = vmatprep.subr.mxu0 0.0
    %116 = vmatpush1.msra.mxu0 0.0
    %117 = vmatprep.subr.mxu0 0.0
    %118 = vmatpush1.msra.mxu0 0.0
    %119 = vmatprep.subr.mxu0 0.0
    %120 = vmatpush1.msra.mxu0 0.0
    %121 = vmatprep.subr.mxu0 0.0
    %122 = vmatpush1.msra.mxu0 0.0
    %123 = vmatprep.subr.mxu0 0.0
    %124 = vmatpush1.msra.mxu0 0.0
    %125 = vmatprep.subr.mxu0 0.0
    %126 = vmatpush1.msra.mxu0 0.0
    %127 = vmatprep.subr.mxu0 0.0
    %128 = vmatpush1.msra.mxu0 0.0
    %129 = vmatprep.subr.mxu0 0.0
    %130 = vmatpush1.msra.mxu0 0.0
    %131 = vmatprep.subr.mxu0 0.0
    %132 = vmatpush1.msra.mxu0 0.0
    %133 = vmatprep.subr.mxu0 0.0
    %134 = vmatpush1.msra.mxu0 0.0
    %135 = vmatprep.subr.mxu0 0.0
    %136 = vmatpush1.msra.mxu0 0.0
    %137 = vmatprep.subr.mxu0 0.0
    %138 = vmatpush1.msra.mxu0 0.0
    %139 = vmatprep.subr.mxu0 0.0
    %140 = vmatpush1.msra.mxu0 0.0
    %141 = vmatprep.subr.mxu0 0.0
    %142 = vmatpush1.msra.mxu0 0.0
    %143 = vmatprep.subr.mxu0 0.0
    %144 = vmatpush1.msra.mxu0 0.0
    %145 = vmatprep.mubr.f32.mxu0 0.0
    %146 = vmatmul.mubr.f32.gmra.mrb[0].mxu0 %v46
    %v147 = vpop.f32.mrb[0].mxu0
    %v148 = vadd.f32 %v42, %v147
    %v149 = vpop.f32.mrb[0].mxu0
    %150 = vmatprep.mubr.f32.mxu0 0.0
    %151 = vmatmul.mubr.f32.gmra.mrb[0].mxu0 %v49
    %v152 = vpop.f32.mrb[0].mxu0
    %v153 = vadd.f32 %v42, %v152
    %v154 = vpop.f32.mrb[0].mxu0
    %155 = vmatprep.mubr.f32.mxu0 0.0
    %156 = vmatmul.mubr.f32.gmra.mrb[0].mxu0 %v52
    %v157 = vpop.f32.mrb[0].mxu0
    %v158 = vadd.f32 %v42, %v157
    %v159 = vpop.f32.mrb[0].mxu0
    %160 = vmatprep.mubr.f32.mxu0 0.0
    %161 = vmatmul.mubr.f32.gmra.mrb[0].mxu0 %v55
    %v162 = vpop.f32.mrb[0].mxu0
    %v163 = vadd.f32 %v42, %v162
    %v164 = vpop.f32.mrb[0].mxu0
    %165 = vmatprep.mubr.f32.mxu0 0.0
    %166 = vmatmul.mubr.f32.gmra.mrb[0].mxu0 %v58
    %v167 = vpop.f32.mrb[0].mxu0
    %v168 = vadd.f32 %v42, %v167
    %v169 = vpop.f32.mrb[0].mxu0
    %170 = vmatprep.mubr.f32.mxu0 0.0
    %171 = vmatmul.mubr.f32.gmra.mrb[0].mxu0 %v61
    %v172 = vpop.f32.mrb[0].mxu0
    %v173 = vadd.f32 %v42, %v172
    %v174 = vpop.f32.mrb[0].mxu0
    %175 = vmatprep.mubr.f32.mxu0 0.0
    %176 = vmatmul.mubr.f32.gmra.mrb[0].mxu0 %v64
    %v177 = vpop.f32.mrb[0].mxu0
    %v178 = vadd.f32 %v42, %v177
    %v179 = vpop.f32.mrb[0].mxu0
    %180 = vmatprep.mubr.f32.mxu0 0.0
    %181 = vmatmul.mubr.f32.gmra.mrb[0].mxu0 %v67
    %v182 = vpop.f32.mrb[0].mxu0
    %v183 = vadd.f32 %v42, %v182
    %v184 = vpop.f32.mrb[0].mxu0
    %185 = vmatprep.mubr.f32.mxu0 0.0
    %186 = vmatmul.mubr.f32.gmra.mrb[0].mxu0 %v70
    %v187 = vpop.f32.mrb[0].mxu0
    %v188 = vadd.f32 %v42, %v187
    %v189 = vpop.f32.mrb[0].mxu0
    %190 = vmatprep.mubr.f32.mxu0 0.0
    %191 = vmatmul.mubr.f32.gmra.mrb[0].mxu0 %v73
    %v192 = vpop.f32.mrb[0].mxu0
    %v193 = vadd.f32 %v42, %v192
    %v194 = vpop.f32.mrb[0].mxu0
    %195 = vmatprep.mubr.f32.mxu0 0.0
    %196 = vmatmul.mubr.f32.gmra.mrb[0].mxu0 %v76
    %v197 = vpop.f32.mrb[0].mxu0
    %v198 = vadd.f32 %v42, %v197
    %v199 = vpop.f32.mrb[0].mxu0
    %200 = vmatprep.mubr.f32.mxu0 0.0
    %201 = vmatmul.mubr.f32.gmra.mrb[0].mxu0 %v79
    %v202 = vpop.f32.mrb[0].mxu0
    %v203 = vadd.f32 %v42, %v202
    %v204 = vpop.f32.mrb[0].mxu0
    %205 = vdwg.mxu0
    %206 = vst [vmem:[#allocation2] sm:$0xff] %v148
    %207 = vst [vmem:[#allocation2 + $0x8] sm:$0xff] %v153
    %208 = vst [vmem:[#allocation2 + $0x10] sm:$0xff] %v158
    %209 = vst [vmem:[#allocation2 + $0x18] sm:$0xff] %v163
    %210 = vst [vmem:[#allocation2 + $0x20] sm:$0xff] %v168
    %211 = vst [vmem:[#allocation2 + $0x28] sm:$0xff] %v173
    %212 = vst [vmem:[#allocation2 + $0x30] sm:$0xff] %v178
    %213 = vst [vmem:[#allocation2 + $0x38] sm:$0xff] %v183
    %214 = vst [vmem:[#allocation2 + $0x40] sm:$0xff] %v188
    %215 = vst [vmem:[#allocation2 + $0x48] sm:$0xff] %v193
    %216 = vst [vmem:[#allocation2 + $0x50] sm:$0xff] %v198
    %217 = vst [vmem:[#allocation2 + $0x58] sm:$0xff] %v203
    %v218 = vld [vmem:[%s0] sm:$0xff]
    %v219 = vld [vmem:[%s3] sm:$0xff]
    %v220 = vld [vmem:[%s3 + $0x8] sm:$0xff]
    %v221 = vld [vmem:[%s3 + $0x10] sm:$0xff]
    %v222 = vld [vmem:[%s3 + $0x18] sm:$0xff]
    %v223 = vld [vmem:[#allocation2] sm:$0xff]
    %vm224 = vcmask 261120
    %v226 = vsel %vm224, 0.0, 0
    %228 = vmatprep.subr.mxu0 0.0
    %229 = vmatpush1.msra.mxu0 %v219
    %230 = vmatprep.subr.mxu0 0.0
    %231 = vmatpush1.msra.mxu0 %v220
    %232 = vmatprep.subr.mxu0 0.0
    %233 = vmatpush1.msra.mxu0 %v221
    %234 = vmatprep.subr.mxu0 0.0
    %235 = vmatpush1.msra.mxu0 %v222
    %236 = vmatprep.subr.mxu0 0.0
    %237 = vmatpush1.msra.mxu0 0.0
    %238 = vmatprep.subr.mxu0 0.0
    %239 = vmatpush1.msra.mxu0 0.0
    %240 = vmatprep.subr.mxu0 0.0
    %241 = vmatpush1.msra.mxu0 0.0
    %242 = vmatprep.subr.mxu0 0.0
    %243 = vmatpush1.msra.mxu0 0.0
    %244 = vmatprep.subr.mxu0 0.0
    %245 = vmatpush1.msra.mxu0 0.0
    %246 = vmatprep.subr.mxu0 0.0
    %247 = vmatpush1.msra.mxu0 0.0
    %248 = vmatprep.subr.mxu0 0.0
    %249 = vmatpush1.msra.mxu0 0.0
    %250 = vmatprep.subr.mxu0 0.0
    %251 = vmatpush1.msra.mxu0 0.0
    %252 = vmatprep.subr.mxu0 0.0
    %253 = vmatpush1.msra.mxu0 0.0
    %254 = vmatprep.subr.mxu0 0.0
    %255 = vmatpush1.msra.mxu0 0.0
    %256 = vmatprep.subr.mxu0 0.0
    %257 = vmatpush1.msra.mxu0 0.0
    %258 = vmatprep.subr.mxu0 0.0
    %259 = vmatpush1.msra.mxu0 0.0
    %260 = vmatprep.subr.mxu0 0.0
    %261 = vmatpush1.msra.mxu0 0.0
    %262 = vmatprep.subr.mxu0 0.0
    %263 = vmatpush1.msra.mxu0 0.0
    %264 = vmatprep.subr.mxu0 0.0
    %265 = vmatpush1.msra.mxu0 0.0
    %266 = vmatprep.subr.mxu0 0.0
    %267 = vmatpush1.msra.mxu0 0.0
    %268 = vmatprep.subr.mxu0 0.0
    %269 = vmatpush1.msra.mxu0 0.0
    %270 = vmatprep.subr.mxu0 0.0
    %271 = vmatpush1.msra.mxu0 0.0
    %272 = vmatprep.subr.mxu0 0.0
    %273 = vmatpush1.msra.mxu0 0.0
    %274 = vmatprep.subr.mxu0 0.0
    %275 = vmatpush1.msra.mxu0 0.0
    %276 = vmatprep.subr.mxu0 0.0
    %277 = vmatpush1.msra.mxu0 0.0
    %278 = vmatprep.subr.mxu0 0.0
    %279 = vmatpush1.msra.mxu0 0.0
    %280 = vmatprep.subr.mxu0 0.0
    %281 = vmatpush1.msra.mxu0 0.0
    %282 = vmatprep.subr.mxu0 0.0
    %283 = vmatpush1.msra.mxu0 0.0
    %284 = vmatprep.subr.mxu0 0.0
    %285 = vmatpush1.msra.mxu0 0.0
    %286 = vmatprep.subr.mxu0 0.0
    %287 = vmatpush1.msra.mxu0 0.0
    %288 = vmatprep.subr.mxu0 0.0
    %289 = vmatpush1.msra.mxu0 0.0
    %290 = vmatprep.subr.mxu0 0.0
    %291 = vmatpush1.msra.mxu0 0.0
    %292 = vmatprep.mubr.f32.mxu0 0.0
    %293 = vmatmul.mubr.f32.gmra.mrb[0].mxu0 %v226
    %v294 = vpop.f32.mrb[0].mxu0
    %v295 = vadd.f32 0.0, %v294
    %v296 = vpop.f32.mrb[0].mxu0
    %297 = vdwg.mxu0
    %v298 = vadd.f32 %v223, %v295
    %v299 = vxor.u32 %v298, 2147483648
    %v300 = vmul.f32 %v299, 1.442695
    %v301 = vpow.pop %v300
    %v302 = vadd.f32 %v301, 1.0
    %v303 = vrcp.pop %v302
    %v304 = vmul.f32 1.0, %v303
    %v305 = vtanh.pop %v298
    %v306 = vmul.f32 %v304, 0.0
    %308 = vrot.lane.b32.xlu0 %v305, 64
    %v309 = vpop.permute.xlu0 %308
    %v311 = vmul.f32 %v304, %v309
    %313 = vrot.lane.b32.xlu0 %v311, 32
    %v314 = vpop.permute.xlu0 %313
    %v316 = vadd.f32 %v306, %v314
    %v317 = vtanh.pop %v316
    %319 = vrot.lane.b32.xlu0 %v317, 64
    %v320 = vpop.permute.xlu0 %319
    %v322 = vmul.f32 %v304, %v320
    %vm323 = vcmp.gt.s32.totalorder %v218, 0
    %v324 = vsel %vm323, 1, 0
    %325 = vset.pattern.permute.xlu0 0
    %326 = vperm.xlu0 %325, %v324
    %v327 = vpop.permute.xlu0 %326
    %vm328 = vcmp.eq.s32.totalorder %v327, 1
    %v329 = vsel %vm328, %v316, 0.0
    %v330 = vsel %vm328, %v322, 0.0
    %332 = vrot.lane.b32.xlu0 %v330, 32
    %v333 = vpop.permute.xlu0 %332
    %335 = vst.msk [vmem:[%s5] sm:$0xff] %vm224, %v333
    %s336 = scalar_lea.vmem [#allocation2], 8
    %v337 = vld [vmem:[%s336] sm:$0xff]
    %v338 = vsel %vm224, %v333, 0
    %340 = vmatprep.subr.mxu0 0.0
    %341 = vmatpush1.msra.mxu0 %v219
    %342 = vmatprep.subr.mxu0 0.0
    %343 = vmatpush1.msra.mxu0 %v220
    %344 = vmatprep.subr.mxu0 0.0
    %345 = vmatpush1.msra.mxu0 %v221
    %346 = vmatprep.subr.mxu0 0.0
    %347 = vmatpush1.msra.mxu0 %v222
    %348 = vmatprep.subr.mxu0 0.0
    %349 = vmatpush1.msra.mxu0 0.0
    %350 = vmatprep.subr.mxu0 0.0
    %351 = vmatpush1.msra.mxu0 0.0
    %352 = vmatprep.subr.mxu0 0.0
    %353 = vmatpush1.msra.mxu0 0.0
    %354 = vmatprep.subr.mxu0 0.0
    %355 = vmatpush1.msra.mxu0 0.0
    %356 = vmatprep.subr.mxu0 0.0
    %357 = vmatpush1.msra.mxu0 0.0
    %358 = vmatprep.subr.mxu0 0.0
    %359 = vmatpush1.msra.mxu0 0.0
    %360 = vmatprep.subr.mxu0 0.0
    %361 = vmatpush1.msra.mxu0 0.0
    %362 = vmatprep.subr.mxu0 0.0
    %363 = vmatpush1.msra.mxu0 0.0
    %364 = vmatprep.subr.mxu0 0.0
    %365 = vmatpush1.msra.mxu0 0.0
    %366 = vmatprep.subr.mxu0 0.0
    %367 = vmatpush1.msra.mxu0 0.0
    %368 = vmatprep.subr.mxu0 0.0
    %369 = vmatpush1.msra.mxu0 0.0
    %370 = vmatprep.subr.mxu0 0.0
    %371 = vmatpush1.msra.mxu0 0.0
    %372 = vmatprep.subr.mxu0 0.0
    %373 = vmatpush1.msra.mxu0 0.0
    %374 = vmatprep.subr.mxu0 0.0
    %375 = vmatpush1.msra.mxu0 0.0
    %376 = vmatprep.subr.mxu0 0.0
    %377 = vmatpush1.msra.mxu0 0.0
    %378 = vmatprep.subr.mxu0 0.0
    %379 = vmatpush1.msra.mxu0 0.0
    %380 = vmatprep.subr.mxu0 0.0
    %381 = vmatpush1.msra.mxu0 0.0
    %382 = vmatprep.subr.mxu0 0.0
    %383 = vmatpush1.msra.mxu0 0.0
    %384 = vmatprep.subr.mxu0 0.0
    %385 = vmatpush1.msra.mxu0 0.0
    %386 = vmatprep.subr.mxu0 0.0
    %387 = vmatpush1.msra.mxu0 0.0
    %388 = vmatprep.subr.mxu0 0.0
    %389 = vmatpush1.msra.mxu0 0.0
    %390 = vmatprep.subr.mxu0 0.0
    %391 = vmatpush1.msra.mxu0 0.0
    %392 = vmatprep.subr.mxu0 0.0
    %393 = vmatpush1.msra.mxu0 0.0
    %394 = vmatprep.subr.mxu0 0.0
    %395 = vmatpush1.msra.mxu0 0.0
    %396 = vmatprep.subr.mxu0 0.0
    %397 = vmatpush1.msra.mxu0 0.0
    %398 = vmatprep.subr.mxu0 0.0
    %399 = vmatpush1.msra.mxu0 0.0
    %400 = vmatprep.subr.mxu0 0.0
    %401 = vmatpush1.msra.mxu0 0.0
    %402 = vmatprep.subr.mxu0 0.0
    %403 = vmatpush1.msra.mxu0 0.0
    %404 = vmatprep.mubr.f32.mxu0 0.0
    %405 = vmatmul.mubr.f32.gmra.mrb[0].mxu0 %v338
    %v406 = vpop.f32.mrb[0].mxu0
    %v407 = vadd.f32 0.0, %v406
    %v408 = vpop.f32.mrb[0].mxu0
    %409 = vdwg.mxu0
    %v410 = vadd.f32 %v337, %v407
    %v411 = vxor.u32 %v410, 2147483648
    %v412 = vmul.f32 %v411, 1.442695
    %v413 = vpow.pop %v412
    %v414 = vadd.f32 %v413, 1.0
    %v415 = vrcp.pop %v414
    %v416 = vmul.f32 1.0, %v415
    %v417 = vtanh.pop %v410
    %v418 = vmul.f32 %v416, %v329
    %420 = vrot.lane.b32.xlu0 %v417, 64
    %v421 = vpop.permute.xlu0 %420
    %v423 = vmul.f32 %v416, %v421
    %425 = vrot.lane.b32.xlu0 %v423, 32
    %v426 = vpop.permute.xlu0 %425
    %v428 = vadd.f32 %v418, %v426
    %v429 = vtanh.pop %v428
    %431 = vrot.lane.b32.xlu0 %v429, 64
    %v432 = vpop.permute.xlu0 %431
    %v434 = vmul.f32 %v416, %v432
    %vm435 = vcmp.gt.s32.totalorder %v218, 1
    %v436 = vsel %vm435, 1, 0
    %437 = vset.pattern.permute.xlu0 0
    %438 = vperm.xlu0 %437, %v436
    %v439 = vpop.permute.xlu0 %438
    %vm440 = vcmp.eq.s32.totalorder %v439, 1
    %v441 = vsel %vm440, %v428, %v329
    %v442 = vsel %vm440, %v434, %v330
    %v443 = vsel %vm440, %v434, 0.0
    %445 = vrot.lane.b32.xlu0 %v443, 32
    %v446 = vpop.permute.xlu0 %445
    %s448 = scalar_lea.vmem %s5, 8
    %449 = vst.msk [vmem:[%s448] sm:$0xff] %vm224, %v446
    %s450 = scalar_lea.vmem [#allocation2], 16
    %v451 = vld [vmem:[%s450] sm:$0xff]
    %453 = vrot.lane.b32.xlu0 %v442, 32
    %v454 = vpop.permute.xlu0 %453
    %v455 = vsel %vm224, %v454, 0
    %457 = vmatprep.subr.mxu0 0.0
    %458 = vmatpush1.msra.mxu0 %v219
    %459 = vmatprep.subr.mxu0 0.0
    %460 = vmatpush1.msra.mxu0 %v220
    %461 = vmatprep.subr.mxu0 0.0
    %462 = vmatpush1.msra.mxu0 %v221
    %463 = vmatprep.subr.mxu0 0.0
    %464 = vmatpush1.msra.mxu0 %v222
    %465 = vmatprep.subr.mxu0 0.0
    %466 = vmatpush1.msra.mxu0 0.0
    %467 = vmatprep.subr.mxu0 0.0
    %468 = vmatpush1.msra.mxu0 0.0
    %469 = vmatprep.subr.mxu0 0.0
    %470 = vmatpush1.msra.mxu0 0.0
    %471 = vmatprep.subr.mxu0 0.0
    %472 = vmatpush1.msra.mxu0 0.0
    %473 = vmatprep.subr.mxu0 0.0
    %474 = vmatpush1.msra.mxu0 0.0
    %475 = vmatprep.subr.mxu0 0.0
    %476 = vmatpush1.msra.mxu0 0.0
    %477 = vmatprep.subr.mxu0 0.0
    %478 = vmatpush1.msra.mxu0 0.0
    %479 = vmatprep.subr.mxu0 0.0
    %480 = vmatpush1.msra.mxu0 0.0
    %481 = vmatprep.subr.mxu0 0.0
    %482 = vmatpush1.msra.mxu0 0.0
    %483 = vmatprep.subr.mxu0 0.0
    %484 = vmatpush1.msra.mxu0 0.0
    %485 = vmatprep.subr.mxu0 0.0
    %486 = vmatpush1.msra.mxu0 0.0
    %487 = vmatprep.subr.mxu0 0.0
    %488 = vmatpush1.msra.mxu0 0.0
    %489 = vmatprep.subr.mxu0 0.0
    %490 = vmatpush1.msra.mxu0 0.0
    %491 = vmatprep.subr.mxu0 0.0
    %492 = vmatpush1.msra.mxu0 0.0
    %493 = vmatprep.subr.mxu0 0.0
    %494 = vmatpush1.msra.mxu0 0.0
    %495 = vmatprep.subr.mxu0 0.0
    %496 = vmatpush1.msra.mxu0 0.0
    %497 = vmatprep.subr.mxu0 0.0
    %498 = vmatpush1.msra.mxu0 0.0
    %499 = vmatprep.subr.mxu0 0.0
    %500 = vmatpush1.msra.mxu0 0.0
    %501 = vmatprep.subr.mxu0 0.0
    %502 = vmatpush1.msra.mxu0 0.0
    %503 = vmatprep.subr.mxu0 0.0
    %504 = vmatpush1.msra.mxu0 0.0
    %505 = vmatprep.subr.mxu0 0.0
    %506 = vmatpush1.msra.mxu0 0.0
    %507 = vmatprep.subr.mxu0 0.0
    %508 = vmatpush1.msra.mxu0 0.0
    %509 = vmatprep.subr.mxu0 0.0
    %510 = vmatpush1.msra.mxu0 0.0
    %511 = vmatprep.subr.mxu0 0.0
    %512 = vmatpush1.msra.mxu0 0.0
    %513 = vmatprep.subr.mxu0 0.0
    %514 = vmatpush1.msra.mxu0 0.0
    %515 = vmatprep.subr.mxu0 0.0
    %516 = vmatpush1.msra.mxu0 0.0
    %517 = vmatprep.subr.mxu0 0.0
    %518 = vmatpush1.msra.mxu0 0.0
    %519 = vmatprep.subr.mxu0 0.0
    %520 = vmatpush1.msra.mxu0 0.0
    %521 = vmatprep.mubr.f32.mxu0 0.0
    %522 = vmatmul.mubr.f32.gmra.mrb[0].mxu0 %v455
    %v523 = vpop.f32.mrb[0].mxu0
    %v524 = vadd.f32 0.0, %v523
    %v525 = vpop.f32.mrb[0].mxu0
    %526 = vdwg.mxu0
    %v527 = vadd.f32 %v451, %v524
    %v528 = vxor.u32 %v527, 2147483648
    %v529 = vmul.f32 %v528, 1.442695
    %v530 = vpow.pop %v529
    %v531 = vadd.f32 %v530, 1.0
    %v532 = vrcp.pop %v531
    %v533 = vmul.f32 1.0, %v532
    %v534 = vtanh.pop %v527
    %v535 = vmul.f32 %v533, %v441
    %537 = vrot.lane.b32.xlu0 %v534, 64
    %v538 = vpop.permute.xlu0 %537
    %v540 = vmul.f32 %v533, %v538
    %542 = vrot.lane.b32.xlu0 %v540, 32
    %v543 = vpop.permute.xlu0 %542
    %v545 = vadd.f32 %v535, %v543
    %v546 = vtanh.pop %v545
    %548 = vrot.lane.b32.xlu0 %v546, 64
    %v549 = vpop.permute.xlu0 %548
    %v551 = vmul.f32 %v533, %v549
    %vm552 = vcmp.gt.s32.totalorder %v218, 2
    %v553 = vsel %vm552, 1, 0
    %554 = vset.pattern.permute.xlu0 0
    %555 = vperm.xlu0 %554, %v553
    %v556 = vpop.permute.xlu0 %555
    %vm557 = vcmp.eq.s32.totalorder %v556, 1
    %v558 = vsel %vm557, %v545, %v441
    %v559 = vsel %vm557, %v551, %v442
    %v560 = vsel %vm557, %v551, 0.0
    %562 = vrot.lane.b32.xlu0 %v560, 32
    %v563 = vpop.permute.xlu0 %562
    %s565 = scalar_lea.vmem %s5, 16
    %566 = vst.msk [vmem:[%s565] sm:$0xff] %vm224, %v563
    %s567 = scalar_lea.vmem [#allocation2], 24
    %v568 = vld [vmem:[%s567] sm:$0xff]
    %570 = vrot.lane.b32.xlu0 %v559, 32
    %v571 = vpop.permute.xlu0 %570
    %v572 = vsel %vm224, %v571, 0
    %574 = vmatprep.subr.mxu0 0.0
    %575 = vmatpush1.msra.mxu0 %v219
    %576 = vmatprep.subr.mxu0 0.0
    %577 = vmatpush1.msra.mxu0 %v220
    %578 = vmatprep.subr.mxu0 0.0
    %579 = vmatpush1.msra.mxu0 %v221
    %580 = vmatprep.subr.mxu0 0.0
    %581 = vmatpush1.msra.mxu0 %v222
    %582 = vmatprep.subr.mxu0 0.0
    %583 = vmatpush1.msra.mxu0 0.0
    %584 = vmatprep.subr.mxu0 0.0
    %585 = vmatpush1.msra.mxu0 0.0
    %586 = vmatprep.subr.mxu0 0.0
    %587 = vmatpush1.msra.mxu0 0.0
    %588 = vmatprep.subr.mxu0 0.0
    %589 = vmatpush1.msra.mxu0 0.0
    %590 = vmatprep.subr.mxu0 0.0
    %591 = vmatpush1.msra.mxu0 0.0
    %592 = vmatprep.subr.mxu0 0.0
    %593 = vmatpush1.msra.mxu0 0.0
    %594 = vmatprep.subr.mxu0 0.0
    %595 = vmatpush1.msra.mxu0 0.0
    %596 = vmatprep.subr.mxu0 0.0
    %597 = vmatpush1.msra.mxu0 0.0
    %598 = vmatprep.subr.mxu0 0.0
    %599 = vmatpush1.msra.mxu0 0.0
    %600 = vmatprep.subr.mxu0 0.0
    %601 = vmatpush1.msra.mxu0 0.0
    %602 = vmatprep.subr.mxu0 0.0
    %603 = vmatpush1.msra.mxu0 0.0
    %604 = vmatprep.subr.mxu0 0.0
    %605 = vmatpush1.msra.mxu0 0.0
    %606 = vmatprep.subr.mxu0 0.0
    %607 = vmatpush1.msra.mxu0 0.0
    %608 = vmatprep.subr.mxu0 0.0
    %609 = vmatpush1.msra.mxu0 0.0
    %610 = vmatprep.subr.mxu0 0.0
    %611 = vmatpush1.msra.mxu0 0.0
    %612 = vmatprep.subr.mxu0 0.0
    %613 = vmatpush1.msra.mxu0 0.0
    %614 = vmatprep.subr.mxu0 0.0
    %615 = vmatpush1.msra.mxu0 0.0
    %616 = vmatprep.subr.mxu0 0.0
    %617 = vmatpush1.msra.mxu0 0.0
    %618 = vmatprep.subr.mxu0 0.0
    %619 = vmatpush1.msra.mxu0 0.0
    %620 = vmatprep.subr.mxu0 0.0
    %621 = vmatpush1.msra.mxu0 0.0
    %622 = vmatprep.subr.mxu0 0.0
    %623 = vmatpush1.msra.mxu0 0.0
    %624 = vmatprep.subr.mxu0 0.0
    %625 = vmatpush1.msra.mxu0 0.0
    %626 = vmatprep.subr.mxu0 0.0
    %627 = vmatpush1.msra.mxu0 0.0
    %628 = vmatprep.subr.mxu0 0.0
    %629 = vmatpush1.msra.mxu0 0.0
    %630 = vmatprep.subr.mxu0 0.0
    %631 = vmatpush1.msra.mxu0 0.0
    %632 = vmatprep.subr.mxu0 0.0
    %633 = vmatpush1.msra.mxu0 0.0
    %634 = vmatprep.subr.mxu0 0.0
    %635 = vmatpush1.msra.mxu0 0.0
    %636 = vmatprep.subr.mxu0 0.0
    %637 = vmatpush1.msra.mxu0 0.0
    %638 = vmatprep.mubr.f32.mxu0 0.0
    %639 = vmatmul.mubr.f32.gmra.mrb[0].mxu0 %v572
    %v640 = vpop.f32.mrb[0].mxu0
    %v641 = vadd.f32 0.0, %v640
    %v642 = vpop.f32.mrb[0].mxu0
    %643 = vdwg.mxu0
    %v644 = vadd.f32 %v568, %v641
    %v645 = vxor.u32 %v644, 2147483648
    %v646 = vmul.f32 %v645, 1.442695
    %v647 = vpow.pop %v646
    %v648 = vadd.f32 %v647, 1.0
    %v649 = vrcp.pop %v648
    %v650 = vmul.f32 1.0, %v649
    %v651 = vtanh.pop %v644
    %v652 = vmul.f32 %v650, %v558
    %654 = vrot.lane.b32.xlu0 %v651, 64
    %v655 = vpop.permute.xlu0 %654
    %v657 = vmul.f32 %v650, %v655
    %659 = vrot.lane.b32.xlu0 %v657, 32
    %v660 = vpop.permute.xlu0 %659
    %v662 = vadd.f32 %v652, %v660
    %v663 = vtanh.pop %v662
    %665 = vrot.lane.b32.xlu0 %v663, 64
    %v666 = vpop.permute.xlu0 %665
    %v668 = vmul.f32 %v650, %v666
    %vm669 = vcmp.gt.s32.totalorder %v218, 3
    %v670 = vsel %vm669, 1, 0
    %671 = vset.pattern.permute.xlu0 0
    %672 = vperm.xlu0 %671, %v670
    %v673 = vpop.permute.xlu0 %672
    %vm674 = vcmp.eq.s32.totalorder %v673, 1
    %v675 = vsel %vm674, %v662, %v558
    %v676 = vsel %vm674, %v668, %v559
    %v677 = vsel %vm674, %v668, 0.0
    %679 = vrot.lane.b32.xlu0 %v677, 32
    %v680 = vpop.permute.xlu0 %679
    %s682 = scalar_lea.vmem %s5, 24
    %683 = vst.msk [vmem:[%s682] sm:$0xff] %vm224, %v680
    %s684 = scalar_lea.vmem [#allocation2], 32
    %v685 = vld [vmem:[%s684] sm:$0xff]
    %687 = vrot.lane.b32.xlu0 %v676, 32
    %v688 = vpop.permute.xlu0 %687
    %v689 = vsel %vm224, %v688, 0
    %691 = vmatprep.subr.mxu0 0.0
    %692 = vmatpush1.msra.mxu0 %v219
    %693 = vmatprep.subr.mxu0 0.0
    %694 = vmatpush1.msra.mxu0 %v220
    %695 = vmatprep.subr.mxu0 0.0
    %696 = vmatpush1.msra.mxu0 %v221
    %697 = vmatprep.subr.mxu0 0.0
    %698 = vmatpush1.msra.mxu0 %v222
    %699 = vmatprep.subr.mxu0 0.0
    %700 = vmatpush1.msra.mxu0 0.0
    %701 = vmatprep.subr.mxu0 0.0
    %702 = vmatpush1.msra.mxu0 0.0
    %703 = vmatprep.subr.mxu0 0.0
    %704 = vmatpush1.msra.mxu0 0.0
    %705 = vmatprep.subr.mxu0 0.0
    %706 = vmatpush1.msra.mxu0 0.0
    %707 = vmatprep.subr.mxu0 0.0
    %708 = vmatpush1.msra.mxu0 0.0
    %709 = vmatprep.subr.mxu0 0.0
    %710 = vmatpush1.msra.mxu0 0.0
    %711 = vmatprep.subr.mxu0 0.0
    %712 = vmatpush1.msra.mxu0 0.0
    %713 = vmatprep.subr.mxu0 0.0
    %714 = vmatpush1.msra.mxu0 0.0
    %715 = vmatprep.subr.mxu0 0.0
    %716 = vmatpush1.msra.mxu0 0.0
    %717 = vmatprep.subr.mxu0 0.0
    %718 = vmatpush1.msra.mxu0 0.0
    %719 = vmatprep.subr.mxu0 0.0
    %720 = vmatpush1.msra.mxu0 0.0
    %721 = vmatprep.subr.mxu0 0.0
    %722 = vmatpush1.msra.mxu0 0.0
    %723 = vmatprep.subr.mxu0 0.0
    %724 = vmatpush1.msra.mxu0 0.0
    %725 = vmatprep.subr.mxu0 0.0
    %726 = vmatpush1.msra.mxu0 0.0
    %727 = vmatprep.subr.mxu0 0.0
    %728 = vmatpush1.msra.mxu0 0.0
    %729 = vmatprep.subr.mxu0 0.0
    %730 = vmatpush1.msra.mxu0 0.0
    %731 = vmatprep.subr.mxu0 0.0
    %732 = vmatpush1.msra.mxu0 0.0
    %733 = vmatprep.subr.mxu0 0.0
    %734 = vmatpush1.msra.mxu0 0.0
    %735 = vmatprep.subr.mxu0 0.0
    %736 = vmatpush1.msra.mxu0 0.0
    %737 = vmatprep.subr.mxu0 0.0
    %738 = vmatpush1.msra.mxu0 0.0
    %739 = vmatprep.subr.mxu0 0.0
    %740 = vmatpush1.msra.mxu0 0.0
    %741 = vmatprep.subr.mxu0 0.0
    %742 = vmatpush1.msra.mxu0 0.0
    %743 = vmatprep.subr.mxu0 0.0
    %744 = vmatpush1.msra.mxu0 0.0
    %745 = vmatprep.subr.mxu0 0.0
    %746 = vmatpush1.msra.mxu0 0.0
    %747 = vmatprep.subr.mxu0 0.0
    %748 = vmatpush1.msra.mxu0 0.0
    %749 = vmatprep.subr.mxu0 0.0
    %750 = vmatpush1.msra.mxu0 0.0
    %751 = vmatprep.subr.mxu0 0.0
    %752 = vmatpush1.msra.mxu0 0.0
    %753 = vmatprep.subr.mxu0 0.0
    %754 = vmatpush1.msra.mxu0 0.0
    %755 = vmatprep.mubr.f32.mxu0 0.0
    %756 = vmatmul.mubr.f32.gmra.mrb[0].mxu0 %v689
    %v757 = vpop.f32.mrb[0].mxu0
    %v758 = vadd.f32 0.0, %v757
    %v759 = vpop.f32.mrb[0].mxu0
    %760 = vdwg.mxu0
    %v761 = vadd.f32 %v685, %v758
    %v762 = vxor.u32 %v761, 2147483648
    %v763 = vmul.f32 %v762, 1.442695
    %v764 = vpow.pop %v763
    %v765 = vadd.f32 %v764, 1.0
    %v766 = vrcp.pop %v765
    %v767 = vmul.f32 1.0, %v766
    %v768 = vtanh.pop %v761
    %v769 = vmul.f32 %v767, %v675
    %771 = vrot.lane.b32.xlu0 %v768, 64
    %v772 = vpop.permute.xlu0 %771
    %v774 = vmul.f32 %v767, %v772
    %776 = vrot.lane.b32.xlu0 %v774, 32
    %v777 = vpop.permute.xlu0 %776
    %v779 = vadd.f32 %v769, %v777
    %v780 = vtanh.pop %v779
    %782 = vrot.lane.b32.xlu0 %v780, 64
    %v783 = vpop.permute.xlu0 %782
    %v785 = vmul.f32 %v767, %v783
    %vm786 = vcmp.gt.s32.totalorder %v218, 4
    %v787 = vsel %vm786, 1, 0
    %788 = vset.pattern.permute.xlu0 0
    %789 = vperm.xlu0 %788, %v787
    %v790 = vpop.permute.xlu0 %789
    %vm791 = vcmp.eq.s32.totalorder %v790, 1
    %v792 = vsel %vm791, %v779, %v675
    %v793 = vsel %vm791, %v785, %v676
    %v794 = vsel %vm791, %v785, 0.0
    %796 = vrot.lane.b32.xlu0 %v794, 32
    %v797 = vpop.permute.xlu0 %796
    %s799 = scalar_lea.vmem %s5, 32
    %800 = vst.msk [vmem:[%s799] sm:$0xff] %vm224, %v797
    %s801 = scalar_lea.vmem [#allocation2], 40
    %v802 = vld [vmem:[%s801] sm:$0xff]
    %804 = vrot.lane.b32.xlu0 %v793, 32
    %v805 = vpop.permute.xlu0 %804
    %v806 = vsel %vm224, %v805, 0
    %808 = vmatprep.subr.mxu0 0.0
    %809 = vmatpush1.msra.mxu0 %v219
    %810 = vmatprep.subr.mxu0 0.0
    %811 = vmatpush1.msra.mxu0 %v220
    %812 = vmatprep.subr.mxu0 0.0
    %813 = vmatpush1.msra.mxu0 %v221
    %814 = vmatprep.subr.mxu0 0.0
    %815 = vmatpush1.msra.mxu0 %v222
    %816 = vmatprep.subr.mxu0 0.0
    %817 = vmatpush1.msra.mxu0 0.0
    %818 = vmatprep.subr.mxu0 0.0
    %819 = vmatpush1.msra.mxu0 0.0
    %820 = vmatprep.subr.mxu0 0.0
    %821 = vmatpush1.msra.mxu0 0.0
    %822 = vmatprep.subr.mxu0 0.0
    %823 = vmatpush1.msra.mxu0 0.0
    %824 = vmatprep.subr.mxu0 0.0
    %825 = vmatpush1.msra.mxu0 0.0
    %826 = vmatprep.subr.mxu0 0.0
    %827 = vmatpush1.msra.mxu0 0.0
    %828 = vmatprep.subr.mxu0 0.0
    %829 = vmatpush1.msra.mxu0 0.0
    %830 = vmatprep.subr.mxu0 0.0
    %831 = vmatpush1.msra.mxu0 0.0
    %832 = vmatprep.subr.mxu0 0.0
    %833 = vmatpush1.msra.mxu0 0.0
    %834 = vmatprep.subr.mxu0 0.0
    %835 = vmatpush1.msra.mxu0 0.0
    %836 = vmatprep.subr.mxu0 0.0
    %837 = vmatpush1.msra.mxu0 0.0
    %838 = vmatprep.subr.mxu0 0.0
    %839 = vmatpush1.msra.mxu0 0.0
    %840 = vmatprep.subr.mxu0 0.0
    %841 = vmatpush1.msra.mxu0 0.0
    %842 = vmatprep.subr.mxu0 0.0
    %843 = vmatpush1.msra.mxu0 0.0
    %844 = vmatprep.subr.mxu0 0.0
    %845 = vmatpush1.msra.mxu0 0.0
    %846 = vmatprep.subr.mxu0 0.0
    %847 = vmatpush1.msra.mxu0 0.0
    %848 = vmatprep.subr.mxu0 0.0
    %849 = vmatpush1.msra.mxu0 0.0
    %850 = vmatprep.subr.mxu0 0.0
    %851 = vmatpush1.msra.mxu0 0.0
    %852 = vmatprep.subr.mxu0 0.0
    %853 = vmatpush1.msra.mxu0 0.0
    %854 = vmatprep.subr.mxu0 0.0
    %855 = vmatpush1.msra.mxu0 0.0
    %856 = vmatprep.subr.mxu0 0.0
    %857 = vmatpush1.msra.mxu0 0.0
    %858 = vmatprep.subr.mxu0 0.0
    %859 = vmatpush1.msra.mxu0 0.0
    %860 = vmatprep.subr.mxu0 0.0
    %861 = vmatpush1.msra.mxu0 0.0
    %862 = vmatprep.subr.mxu0 0.0
    %863 = vmatpush1.msra.mxu0 0.0
    %864 = vmatprep.subr.mxu0 0.0
    %865 = vmatpush1.msra.mxu0 0.0
    %866 = vmatprep.subr.mxu0 0.0
    %867 = vmatpush1.msra.mxu0 0.0
    %868 = vmatprep.subr.mxu0 0.0
    %869 = vmatpush1.msra.mxu0 0.0
    %870 = vmatprep.subr.mxu0 0.0
    %871 = vmatpush1.msra.mxu0 0.0
    %872 = vmatprep.mubr.f32.mxu0 0.0
    %873 = vmatmul.mubr.f32.gmra.mrb[0].mxu0 %v806
    %v874 = vpop.f32.mrb[0].mxu0
    %v875 = vadd.f32 0.0, %v874
    %v876 = vpop.f32.mrb[0].mxu0
    %877 = vdwg.mxu0
    %v878 = vadd.f32 %v802, %v875
    %v879 = vxor.u32 %v878, 2147483648
    %v880 = vmul.f32 %v879, 1.442695
    %v881 = vpow.pop %v880
    %v882 = vadd.f32 %v881, 1.0
    %v883 = vrcp.pop %v882
    %v884 = vmul.f32 1.0, %v883
    %v885 = vtanh.pop %v878
    %v886 = vmul.f32 %v884, %v792
    %888 = vrot.lane.b32.xlu0 %v885, 64
    %v889 = vpop.permute.xlu0 %888
    %v891 = vmul.f32 %v884, %v889
    %893 = vrot.lane.b32.xlu0 %v891, 32
    %v894 = vpop.permute.xlu0 %893
    %v896 = vadd.f32 %v886, %v894
    %v897 = vtanh.pop %v896
    %899 = vrot.lane.b32.xlu0 %v897, 64
    %v900 = vpop.permute.xlu0 %899
    %v902 = vmul.f32 %v884, %v900
    %vm903 = vcmp.gt.s32.totalorder %v218, 5
    %v904 = vsel %vm903, 1, 0
    %905 = vset.pattern.permute.xlu0 0
    %906 = vperm.xlu0 %905, %v904
    %v907 = vpop.permute.xlu0 %906
    %vm908 = vcmp.eq.s32.totalorder %v907, 1
    %v909 = vsel %vm908, %v896, %v792
    %v910 = vsel %vm908, %v902, %v793
    %v911 = vsel %vm908, %v902, 0.0
    %913 = vrot.lane.b32.xlu0 %v911, 32
    %v914 = vpop.permute.xlu0 %913
    %s916 = scalar_lea.vmem %s5, 40
    %917 = vst.msk [vmem:[%s916] sm:$0xff] %vm224, %v914
    %s918 = scalar_lea.vmem [#allocation2], 48
    %v919 = vld [vmem:[%s918] sm:$0xff]
    %921 = vrot.lane.b32.xlu0 %v910, 32
    %v922 = vpop.permute.xlu0 %921
    %v923 = vsel %vm224, %v922, 0
    %925 = vmatprep.subr.mxu0 0.0
    %926 = vmatpush1.msra.mxu0 %v219
    %927 = vmatprep.subr.mxu0 0.0
    %928 = vmatpush1.msra.mxu0 %v220
    %929 = vmatprep.subr.mxu0 0.0
    %930 = vmatpush1.msra.mxu0 %v221
    %931 = vmatprep.subr.mxu0 0.0
    %932 = vmatpush1.msra.mxu0 %v222
    %933 = vmatprep.subr.mxu0 0.0
    %934 = vmatpush1.msra.mxu0 0.0
    %935 = vmatprep.subr.mxu0 0.0
    %936 = vmatpush1.msra.mxu0 0.0
    %937 = vmatprep.subr.mxu0 0.0
    %938 = vmatpush1.msra.mxu0 0.0
    %939 = vmatprep.subr.mxu0 0.0
    %940 = vmatpush1.msra.mxu0 0.0
    %941 = vmatprep.subr.mxu0 0.0
    %942 = vmatpush1.msra.mxu0 0.0
    %943 = vmatprep.subr.mxu0 0.0
    %944 = vmatpush1.msra.mxu0 0.0
    %945 = vmatprep.subr.mxu0 0.0
    %946 = vmatpush1.msra.mxu0 0.0
    %947 = vmatprep.subr.mxu0 0.0
    %948 = vmatpush1.msra.mxu0 0.0
    %949 = vmatprep.subr.mxu0 0.0
    %950 = vmatpush1.msra.mxu0 0.0
    %951 = vmatprep.subr.mxu0 0.0
    %952 = vmatpush1.msra.mxu0 0.0
    %953 = vmatprep.subr.mxu0 0.0
    %954 = vmatpush1.msra.mxu0 0.0
    %955 = vmatprep.subr.mxu0 0.0
    %956 = vmatpush1.msra.mxu0 0.0
    %957 = vmatprep.subr.mxu0 0.0
    %958 = vmatpush1.msra.mxu0 0.0
    %959 = vmatprep.subr.mxu0 0.0
    %960 = vmatpush1.msra.mxu0 0.0
    %961 = vmatprep.subr.mxu0 0.0
    %962 = vmatpush1.msra.mxu0 0.0
    %963 = vmatprep.subr.mxu0 0.0
    %964 = vmatpush1.msra.mxu0 0.0
    %965 = vmatprep.subr.mxu0 0.0
    %966 = vmatpush1.msra.mxu0 0.0
    %967 = vmatprep.subr.mxu0 0.0
    %968 = vmatpush1.msra.mxu0 0.0
    %969 = vmatprep.subr.mxu0 0.0
    %970 = vmatpush1.msra.mxu0 0.0
    %971 = vmatprep.subr.mxu0 0.0
    %972 = vmatpush1.msra.mxu0 0.0
    %973 = vmatprep.subr.mxu0 0.0
    %974 = vmatpush1.msra.mxu0 0.0
    %975 = vmatprep.subr.mxu0 0.0
    %976 = vmatpush1.msra.mxu0 0.0
    %977 = vmatprep.subr.mxu0 0.0
    %978 = vmatpush1.msra.mxu0 0.0
    %979 = vmatprep.subr.mxu0 0.0
    %980 = vmatpush1.msra.mxu0 0.0
    %981 = vmatprep.subr.mxu0 0.0
    %982 = vmatpush1.msra.mxu0 0.0
    %983 = vmatprep.subr.mxu0 0.0
    %984 = vmatpush1.msra.mxu0 0.0
    %985 = vmatprep.subr.mxu0 0.0
    %986 = vmatpush1.msra.mxu0 0.0
    %987 = vmatprep.subr.mxu0 0.0
    %988 = vmatpush1.msra.mxu0 0.0
    %989 = vmatprep.mubr.f32.mxu0 0.0
    %990 = vmatmul.mubr.f32.gmra.mrb[0].mxu0 %v923
    %v991 = vpop.f32.mrb[0].mxu0
    %v992 = vadd.f32 0.0, %v991
    %v993 = vpop.f32.mrb[0].mxu0
    %994 = vdwg.mxu0
    %v995 = vadd.f32 %v919, %v992
    %v996 = vxor.u32 %v995, 2147483648
    %v997 = vmul.f32 %v996, 1.442695
    %v998 = vpow.pop %v997
    %v999 = vadd.f32 %v998, 1.0
    %v1000 = vrcp.pop %v999
    %v1001 = vmul.f32 1.0, %v1000
    %v1002 = vtanh.pop %v995
    %v1003 = vmul.f32 %v1001, %v909
    %1005 = vrot.lane.b32.xlu0 %v1002, 64
    %v1006 = vpop.permute.xlu0 %1005
    %v1008 = vmul.f32 %v1001, %v1006
    %1010 = vrot.lane.b32.xlu0 %v1008, 32
    %v1011 = vpop.permute.xlu0 %1010
    %v1013 = vadd.f32 %v1003, %v1011
    %v1014 = vtanh.pop %v1013
    %1016 = vrot.lane.b32.xlu0 %v1014, 64
    %v1017 = vpop.permute.xlu0 %1016
    %v1019 = vmul.f32 %v1001, %v1017
    %vm1020 = vcmp.gt.s32.totalorder %v218, 6
    %v1021 = vsel %vm1020, 1, 0
    %1022 = vset.pattern.permute.xlu0 0
    %1023 = vperm.xlu0 %1022, %v1021
    %v1024 = vpop.permute.xlu0 %1023
    %vm1025 = vcmp.eq.s32.totalorder %v1024, 1
    %v1026 = vsel %vm1025, %v1013, %v909
    %v1027 = vsel %vm1025, %v1019, %v910
    %v1028 = vsel %vm1025, %v1019, 0.0
    %1030 = vrot.lane.b32.xlu0 %v1028, 32
    %v1031 = vpop.permute.xlu0 %1030
    %s1033 = scalar_lea.vmem %s5, 48
    %1034 = vst.msk [vmem:[%s1033] sm:$0xff] %vm224, %v1031
    %s1035 = scalar_lea.vmem [#allocation2], 56
    %v1036 = vld [vmem:[%s1035] sm:$0xff]
    %1038 = vrot.lane.b32.xlu0 %v1027, 32
    %v1039 = vpop.permute.xlu0 %1038
    %v1040 = vsel %vm224, %v1039, 0
    %1042 = vmatprep.subr.mxu0 0.0
    %1043 = vmatpush1.msra.mxu0 %v219
    %1044 = vmatprep.subr.mxu0 0.0
    %1045 = vmatpush1.msra.mxu0 %v220
    %1046 = vmatprep.subr.mxu0 0.0
    %1047 = vmatpush1.msra.mxu0 %v221
    %1048 = vmatprep.subr.mxu0 0.0
    %1049 = vmatpush1.msra.mxu0 %v222
    %1050 = vmatprep.subr.mxu0 0.0
    %1051 = vmatpush1.msra.mxu0 0.0
    %1052 = vmatprep.subr.mxu0 0.0
    %1053 = vmatpush1.msra.mxu0 0.0
    %1054 = vmatprep.subr.mxu0 0.0
    %1055 = vmatpush1.msra.mxu0 0.0
    %1056 = vmatprep.subr.mxu0 0.0
    %1057 = vmatpush1.msra.mxu0 0.0
    %1058 = vmatprep.subr.mxu0 0.0
    %1059 = vmatpush1.msra.mxu0 0.0
    %1060 = vmatprep.subr.mxu0 0.0
    %1061 = vmatpush1.msra.mxu0 0.0
    %1062 = vmatprep.subr.mxu0 0.0
    %1063 = vmatpush1.msra.mxu0 0.0
    %1064 = vmatprep.subr.mxu0 0.0
    %1065 = vmatpush1.msra.mxu0 0.0
    %1066 = vmatprep.subr.mxu0 0.0
    %1067 = vmatpush1.msra.mxu0 0.0
    %1068 = vmatprep.subr.mxu0 0.0
    %1069 = vmatpush1.msra.mxu0 0.0
    %1070 = vmatprep.subr.mxu0 0.0
    %1071 = vmatpush1.msra.mxu0 0.0
    %1072 = vmatprep.subr.mxu0 0.0
    %1073 = vmatpush1.msra.mxu0 0.0
    %1074 = vmatprep.subr.mxu0 0.0
    %1075 = vmatpush1.msra.mxu0 0.0
    %1076 = vmatprep.subr.mxu0 0.0
    %1077 = vmatpush1.msra.mxu0 0.0
    %1078 = vmatprep.subr.mxu0 0.0
    %1079 = vmatpush1.msra.mxu0 0.0
    %1080 = vmatprep.subr.mxu0 0.0
    %1081 = vmatpush1.msra.mxu0 0.0
    %1082 = vmatprep.subr.mxu0 0.0
    %1083 = vmatpush1.msra.mxu0 0.0
    %1084 = vmatprep.subr.mxu0 0.0
    %1085 = vmatpush1.msra.mxu0 0.0
    %1086 = vmatprep.subr.mxu0 0.0
    %1087 = vmatpush1.msra.mxu0 0.0
    %1088 = vmatprep.subr.mxu0 0.0
    %1089 = vmatpush1.msra.mxu0 0.0
    %1090 = vmatprep.subr.mxu0 0.0
    %1091 = vmatpush1.msra.mxu0 0.0
    %1092 = vmatprep.subr.mxu0 0.0
    %1093 = vmatpush1.msra.mxu0 0.0
    %1094 = vmatprep.subr.mxu0 0.0
    %1095 = vmatpush1.msra.mxu0 0.0
    %1096 = vmatprep.subr.mxu0 0.0
    %1097 = vmatpush1.msra.mxu0 0.0
    %1098 = vmatprep.subr.mxu0 0.0
    %1099 = vmatpush1.msra.mxu0 0.0
    %1100 = vmatprep.subr.mxu0 0.0
    %1101 = vmatpush1.msra.mxu0 0.0
    %1102 = vmatprep.subr.mxu0 0.0
    %1103 = vmatpush1.msra.mxu0 0.0
    %1104 = vmatprep.subr.mxu0 0.0
    %1105 = vmatpush1.msra.mxu0 0.0
    %1106 = vmatprep.mubr.f32.mxu0 0.0
    %1107 = vmatmul.mubr.f32.gmra.mrb[0].mxu0 %v1040
    %v1108 = vpop.f32.mrb[0].mxu0
    %v1109 = vadd.f32 0.0, %v1108
    %v1110 = vpop.f32.mrb[0].mxu0
    %1111 = vdwg.mxu0
    %v1112 = vadd.f32 %v1036, %v1109
    %v1113 = vxor.u32 %v1112, 2147483648
    %v1114 = vmul.f32 %v1113, 1.442695
    %v1115 = vpow.pop %v1114
    %v1116 = vadd.f32 %v1115, 1.0
    %v1117 = vrcp.pop %v1116
    %v1118 = vmul.f32 1.0, %v1117
    %v1119 = vtanh.pop %v1112
    %v1120 = vmul.f32 %v1118, %v1026
    %1122 = vrot.lane.b32.xlu0 %v1119, 64
    %v1123 = vpop.permute.xlu0 %1122
    %v1125 = vmul.f32 %v1118, %v1123
    %1127 = vrot.lane.b32.xlu0 %v1125, 32
    %v1128 = vpop.permute.xlu0 %1127
    %v1130 = vadd.f32 %v1120, %v1128
    %v1131 = vtanh.pop %v1130
    %1133 = vrot.lane.b32.xlu0 %v1131, 64
    %v1134 = vpop.permute.xlu0 %1133
    %v1136 = vmul.f32 %v1118, %v1134
    %vm1137 = vcmp.gt.s32.totalorder %v218, 7
    %v1138 = vsel %vm1137, 1, 0
    %1139 = vset.pattern.permute.xlu0 0
    %1140 = vperm.xlu0 %1139, %v1138
    %v1141 = vpop.permute.xlu0 %1140
    %vm1142 = vcmp.eq.s32.totalorder %v1141, 1
    %v1143 = vsel %vm1142, %v1130, %v1026
    %v1144 = vsel %vm1142, %v1136, %v1027
    %v1145 = vsel %vm1142, %v1136, 0.0
    %1147 = vrot.lane.b32.xlu0 %v1145, 32
    %v1148 = vpop.permute.xlu0 %1147
    %s1150 = scalar_lea.vmem %s5, 56
    %1151 = vst.msk [vmem:[%s1150] sm:$0xff] %vm224, %v1148
    %s1152 = scalar_lea.vmem [#allocation2], 64
    %v1153 = vld [vmem:[%s1152] sm:$0xff]
    %1155 = vrot.lane.b32.xlu0 %v1144, 32
    %v1156 = vpop.permute.xlu0 %1155
    %v1157 = vsel %vm224, %v1156, 0
    %1159 = vmatprep.subr.mxu0 0.0
    %1160 = vmatpush1.msra.mxu0 %v219
    %1161 = vmatprep.subr.mxu0 0.0
    %1162 = vmatpush1.msra.mxu0 %v220
    %1163 = vmatprep.subr.mxu0 0.0
    %1164 = vmatpush1.msra.mxu0 %v221
    %1165 = vmatprep.subr.mxu0 0.0
    %1166 = vmatpush1.msra.mxu0 %v222
    %1167 = vmatprep.subr.mxu0 0.0
    %1168 = vmatpush1.msra.mxu0 0.0
    %1169 = vmatprep.subr.mxu0 0.0
    %1170 = vmatpush1.msra.mxu0 0.0
    %1171 = vmatprep.subr.mxu0 0.0
    %1172 = vmatpush1.msra.mxu0 0.0
    %1173 = vmatprep.subr.mxu0 0.0
    %1174 = vmatpush1.msra.mxu0 0.0
    %1175 = vmatprep.subr.mxu0 0.0
    %1176 = vmatpush1.msra.mxu0 0.0
    %1177 = vmatprep.subr.mxu0 0.0
    %1178 = vmatpush1.msra.mxu0 0.0
    %1179 = vmatprep.subr.mxu0 0.0
    %1180 = vmatpush1.msra.mxu0 0.0
    %1181 = vmatprep.subr.mxu0 0.0
    %1182 = vmatpush1.msra.mxu0 0.0
    %1183 = vmatprep.subr.mxu0 0.0
    %1184 = vmatpush1.msra.mxu0 0.0
    %1185 = vmatprep.subr.mxu0 0.0
    %1186 = vmatpush1.msra.mxu0 0.0
    %1187 = vmatprep.subr.mxu0 0.0
    %1188 = vmatpush1.msra.mxu0 0.0
    %1189 = vmatprep.subr.mxu0 0.0
    %1190 = vmatpush1.msra.mxu0 0.0
    %1191 = vmatprep.subr.mxu0 0.0
    %1192 = vmatpush1.msra.mxu0 0.0
    %1193 = vmatprep.subr.mxu0 0.0
    %1194 = vmatpush1.msra.mxu0 0.0
    %1195 = vmatprep.subr.mxu0 0.0
    %1196 = vmatpush1.msra.mxu0 0.0
    %1197 = vmatprep.subr.mxu0 0.0
    %1198 = vmatpush1.msra.mxu0 0.0
    %1199 = vmatprep.subr.mxu0 0.0
    %1200 = vmatpush1.msra.mxu0 0.0
    %1201 = vmatprep.subr.mxu0 0.0
    %1202 = vmatpush1.msra.mxu0 0.0
    %1203 = vmatprep.subr.mxu0 0.0
    %1204 = vmatpush1.msra.mxu0 0.0
    %1205 = vmatprep.subr.mxu0 0.0
    %1206 = vmatpush1.msra.mxu0 0.0
    %1207 = vmatprep.subr.mxu0 0.0
    %1208 = vmatpush1.msra.mxu0 0.0
    %1209 = vmatprep.subr.mxu0 0.0
    %1210 = vmatpush1.msra.mxu0 0.0
    %1211 = vmatprep.subr.mxu0 0.0
    %1212 = vmatpush1.msra.mxu0 0.0
    %1213 = vmatprep.subr.mxu0 0.0
    %1214 = vmatpush1.msra.mxu0 0.0
    %1215 = vmatprep.subr.mxu0 0.0
    %1216 = vmatpush1.msra.mxu0 0.0
    %1217 = vmatprep.subr.mxu0 0.0
    %1218 = vmatpush1.msra.mxu0 0.0
    %1219 = vmatprep.subr.mxu0 0.0
    %1220 = vmatpush1.msra.mxu0 0.0
    %1221 = vmatprep.subr.mxu0 0.0
    %1222 = vmatpush1.msra.mxu0 0.0
    %1223 = vmatprep.mubr.f32.mxu0 0.0
    %1224 = vmatmul.mubr.f32.gmra.mrb[0].mxu0 %v1157
    %v1225 = vpop.f32.mrb[0].mxu0
    %v1226 = vadd.f32 0.0, %v1225
    %v1227 = vpop.f32.mrb[0].mxu0
    %1228 = vdwg.mxu0
    %v1229 = vadd.f32 %v1153, %v1226
    %v1230 = vxor.u32 %v1229, 2147483648
    %v1231 = vmul.f32 %v1230, 1.442695
    %v1232 = vpow.pop %v1231
    %v1233 = vadd.f32 %v1232, 1.0
    %v1234 = vrcp.pop %v1233
    %v1235 = vmul.f32 1.0, %v1234
    %v1236 = vtanh.pop %v1229
    %v1237 = vmul.f32 %v1235, %v1143
    %1239 = vrot.lane.b32.xlu0 %v1236, 64
    %v1240 = vpop.permute.xlu0 %1239
    %v1242 = vmul.f32 %v1235, %v1240
    %1244 = vrot.lane.b32.xlu0 %v1242, 32
    %v1245 = vpop.permute.xlu0 %1244
    %v1247 = vadd.f32 %v1237, %v1245
    %v1248 = vtanh.pop %v1247
    %1250 = vrot.lane.b32.xlu0 %v1248, 64
    %v1251 = vpop.permute.xlu0 %1250
    %v1253 = vmul.f32 %v1235, %v1251
    %vm1254 = vcmp.gt.s32.totalorder %v218, 8
    %v1255 = vsel %vm1254, 1, 0
    %1256 = vset.pattern.permute.xlu0 0
    %1257 = vperm.xlu0 %1256, %v1255
    %v1258 = vpop.permute.xlu0 %1257
    %vm1259 = vcmp.eq.s32.totalorder %v1258, 1
    %v1260 = vsel %vm1259, %v1247, %v1143
    %v1261 = vsel %vm1259, %v1253, %v1144
    %v1262 = vsel %vm1259, %v1253, 0.0
    %1264 = vrot.lane.b32.xlu0 %v1262, 32
    %v1265 = vpop.permute.xlu0 %1264
    %s1267 = scalar_lea.vmem %s5, 64
    %1268 = vst.msk [vmem:[%s1267] sm:$0xff] %vm224, %v1265
    %s1269 = scalar_lea.vmem [#allocation2], 72
    %v1270 = vld [vmem:[%s1269] sm:$0xff]
    %1272 = vrot.lane.b32.xlu0 %v1261, 32
    %v1273 = vpop.permute.xlu0 %1272
    %v1274 = vsel %vm224, %v1273, 0
    %1276 = vmatprep.subr.mxu0 0.0
    %1277 = vmatpush1.msra.mxu0 %v219
    %1278 = vmatprep.subr.mxu0 0.0
    %1279 = vmatpush1.msra.mxu0 %v220
    %1280 = vmatprep.subr.mxu0 0.0
    %1281 = vmatpush1.msra.mxu0 %v221
    %1282 = vmatprep.subr.mxu0 0.0
    %1283 = vmatpush1.msra.mxu0 %v222
    %1284 = vmatprep.subr.mxu0 0.0
    %1285 = vmatpush1.msra.mxu0 0.0
    %1286 = vmatprep.subr.mxu0 0.0
    %1287 = vmatpush1.msra.mxu0 0.0
    %1288 = vmatprep.subr.mxu0 0.0
    %1289 = vmatpush1.msra.mxu0 0.0
    %1290 = vmatprep.subr.mxu0 0.0
    %1291 = vmatpush1.msra.mxu0 0.0
    %1292 = vmatprep.subr.mxu0 0.0
    %1293 = vmatpush1.msra.mxu0 0.0
    %1294 = vmatprep.subr.mxu0 0.0
    %1295 = vmatpush1.msra.mxu0 0.0
    %1296 = vmatprep.subr.mxu0 0.0
    %1297 = vmatpush1.msra.mxu0 0.0
    %1298 = vmatprep.subr.mxu0 0.0
    %1299 = vmatpush1.msra.mxu0 0.0
    %1300 = vmatprep.subr.mxu0 0.0
    %1301 = vmatpush1.msra.mxu0 0.0
    %1302 = vmatprep.subr.mxu0 0.0
    %1303 = vmatpush1.msra.mxu0 0.0
    %1304 = vmatprep.subr.mxu0 0.0
    %1305 = vmatpush1.msra.mxu0 0.0
    %1306 = vmatprep.subr.mxu0 0.0
    %1307 = vmatpush1.msra.mxu0 0.0
    %1308 = vmatprep.subr.mxu0 0.0
    %1309 = vmatpush1.msra.mxu0 0.0
    %1310 = vmatprep.subr.mxu0 0.0
    %1311 = vmatpush1.msra.mxu0 0.0
    %1312 = vmatprep.subr.mxu0 0.0
    %1313 = vmatpush1.msra.mxu0 0.0
    %1314 = vmatprep.subr.mxu0 0.0
    %1315 = vmatpush1.msra.mxu0 0.0
    %1316 = vmatprep.subr.mxu0 0.0
    %1317 = vmatpush1.msra.mxu0 0.0
    %1318 = vmatprep.subr.mxu0 0.0
    %1319 = vmatpush1.msra.mxu0 0.0
    %1320 = vmatprep.subr.mxu0 0.0
    %1321 = vmatpush1.msra.mxu0 0.0
    %1322 = vmatprep.subr.mxu0 0.0
    %1323 = vmatpush1.msra.mxu0 0.0
    %1324 = vmatprep.subr.mxu0 0.0
    %1325 = vmatpush1.msra.mxu0 0.0
    %1326 = vmatprep.subr.mxu0 0.0
    %1327 = vmatpush1.msra.mxu0 0.0
    %1328 = vmatprep.subr.mxu0 0.0
    %1329 = vmatpush1.msra.mxu0 0.0
    %1330 = vmatprep.subr.mxu0 0.0
    %1331 = vmatpush1.msra.mxu0 0.0
    %1332 = vmatprep.subr.mxu0 0.0
    %1333 = vmatpush1.msra.mxu0 0.0
    %1334 = vmatprep.subr.mxu0 0.0
    %1335 = vmatpush1.msra.mxu0 0.0
    %1336 = vmatprep.subr.mxu0 0.0
    %1337 = vmatpush1.msra.mxu0 0.0
    %1338 = vmatprep.subr.mxu0 0.0
    %1339 = vmatpush1.msra.mxu0 0.0
    %1340 = vmatprep.mubr.f32.mxu0 0.0
    %1341 = vmatmul.mubr.f32.gmra.mrb[0].mxu0 %v1274
    %v1342 = vpop.f32.mrb[0].mxu0
    %v1343 = vadd.f32 0.0, %v1342
    %v1344 = vpop.f32.mrb[0].mxu0
    %1345 = vdwg.mxu0
    %v1346 = vadd.f32 %v1270, %v1343
    %v1347 = vxor.u32 %v1346, 2147483648
    %v1348 = vmul.f32 %v1347, 1.442695
    %v1349 = vpow.pop %v1348
    %v1350 = vadd.f32 %v1349, 1.0
    %v1351 = vrcp.pop %v1350
    %v1352 = vmul.f32 1.0, %v1351
    %v1353 = vtanh.pop %v1346
    %v1354 = vmul.f32 %v1352, %v1260
    %1356 = vrot.lane.b32.xlu0 %v1353, 64
    %v1357 = vpop.permute.xlu0 %1356
    %v1359 = vmul.f32 %v1352, %v1357
    %1361 = vrot.lane.b32.xlu0 %v1359, 32
    %v1362 = vpop.permute.xlu0 %1361
    %v1364 = vadd.f32 %v1354, %v1362
    %v1365 = vtanh.pop %v1364
    %1367 = vrot.lane.b32.xlu0 %v1365, 64
    %v1368 = vpop.permute.xlu0 %1367
    %v1370 = vmul.f32 %v1352, %v1368
    %vm1371 = vcmp.gt.s32.totalorder %v218, 9
    %v1372 = vsel %vm1371, 1, 0
    %1373 = vset.pattern.permute.xlu0 0
    %1374 = vperm.xlu0 %1373, %v1372
    %v1375 = vpop.permute.xlu0 %1374
    %vm1376 = vcmp.eq.s32.totalorder %v1375, 1
    %v1377 = vsel %vm1376, %v1364, %v1260
    %v1378 = vsel %vm1376, %v1370, %v1261
    %v1379 = vsel %vm1376, %v1370, 0.0
    %1381 = vrot.lane.b32.xlu0 %v1379, 32
    %v1382 = vpop.permute.xlu0 %1381
    %s1384 = scalar_lea.vmem %s5, 72
    %1385 = vst.msk [vmem:[%s1384] sm:$0xff] %vm224, %v1382
    %s1386 = scalar_lea.vmem [#allocation2], 80
    %v1387 = vld [vmem:[%s1386] sm:$0xff]
    %1389 = vrot.lane.b32.xlu0 %v1378, 32
    %v1390 = vpop.permute.xlu0 %1389
    %v1391 = vsel %vm224, %v1390, 0
    %1393 = vmatprep.subr.mxu0 0.0
    %1394 = vmatpush1.msra.mxu0 %v219
    %1395 = vmatprep.subr.mxu0 0.0
    %1396 = vmatpush1.msra.mxu0 %v220
    %1397 = vmatprep.subr.mxu0 0.0
    %1398 = vmatpush1.msra.mxu0 %v221
    %1399 = vmatprep.subr.mxu0 0.0
    %1400 = vmatpush1.msra.mxu0 %v222
    %1401 = vmatprep.subr.mxu0 0.0
    %1402 = vmatpush1.msra.mxu0 0.0
    %1403 = vmatprep.subr.mxu0 0.0
    %1404 = vmatpush1.msra.mxu0 0.0
    %1405 = vmatprep.subr.mxu0 0.0
    %1406 = vmatpush1.msra.mxu0 0.0
    %1407 = vmatprep.subr.mxu0 0.0
    %1408 = vmatpush1.msra.mxu0 0.0
    %1409 = vmatprep.subr.mxu0 0.0
    %1410 = vmatpush1.msra.mxu0 0.0
    %1411 = vmatprep.subr.mxu0 0.0
    %1412 = vmatpush1.msra.mxu0 0.0
    %1413 = vmatprep.subr.mxu0 0.0
    %1414 = vmatpush1.msra.mxu0 0.0
    %1415 = vmatprep.subr.mxu0 0.0
    %1416 = vmatpush1.msra.mxu0 0.0
    %1417 = vmatprep.subr.mxu0 0.0
    %1418 = vmatpush1.msra.mxu0 0.0
    %1419 = vmatprep.subr.mxu0 0.0
    %1420 = vmatpush1.msra.mxu0 0.0
    %1421 = vmatprep.subr.mxu0 0.0
    %1422 = vmatpush1.msra.mxu0 0.0
    %1423 = vmatprep.subr.mxu0 0.0
    %1424 = vmatpush1.msra.mxu0 0.0
    %1425 = vmatprep.subr.mxu0 0.0
    %1426 = vmatpush1.msra.mxu0 0.0
    %1427 = vmatprep.subr.mxu0 0.0
    %1428 = vmatpush1.msra.mxu0 0.0
    %1429 = vmatprep.subr.mxu0 0.0
    %1430 = vmatpush1.msra.mxu0 0.0
    %1431 = vmatprep.subr.mxu0 0.0
    %1432 = vmatpush1.msra.mxu0 0.0
    %1433 = vmatprep.subr.mxu0 0.0
    %1434 = vmatpush1.msra.mxu0 0.0
    %1435 = vmatprep.subr.mxu0 0.0
    %1436 = vmatpush1.msra.mxu0 0.0
    %1437 = vmatprep.subr.mxu0 0.0
    %1438 = vmatpush1.msra.mxu0 0.0
    %1439 = vmatprep.subr.mxu0 0.0
    %1440 = vmatpush1.msra.mxu0 0.0
    %1441 = vmatprep.subr.mxu0 0.0
    %1442 = vmatpush1.msra.mxu0 0.0
    %1443 = vmatprep.subr.mxu0 0.0
    %1444 = vmatpush1.msra.mxu0 0.0
    %1445 = vmatprep.subr.mxu0 0.0
    %1446 = vmatpush1.msra.mxu0 0.0
    %1447 = vmatprep.subr.mxu0 0.0
    %1448 = vmatpush1.msra.mxu0 0.0
    %1449 = vmatprep.subr.mxu0 0.0
    %1450 = vmatpush1.msra.mxu0 0.0
    %1451 = vmatprep.subr.mxu0 0.0
    %1452 = vmatpush1.msra.mxu0 0.0
    %1453 = vmatprep.subr.mxu0 0.0
    %1454 = vmatpush1.msra.mxu0 0.0
    %1455 = vmatprep.subr.mxu0 0.0
    %1456 = vmatpush1.msra.mxu0 0.0
    %1457 = vmatprep.mubr.f32.mxu0 0.0
    %1458 = vmatmul.mubr.f32.gmra.mrb[0].mxu0 %v1391
    %v1459 = vpop.f32.mrb[0].mxu0
    %v1460 = vadd.f32 0.0, %v1459
    %v1461 = vpop.f32.mrb[0].mxu0
    %1462 = vdwg.mxu0
    %v1463 = vadd.f32 %v1387, %v1460
    %v1464 = vxor.u32 %v1463, 2147483648
    %v1465 = vmul.f32 %v1464, 1.442695
    %v1466 = vpow.pop %v1465
    %v1467 = vadd.f32 %v1466, 1.0
    %v1468 = vrcp.pop %v1467
    %v1469 = vmul.f32 1.0, %v1468
    %v1470 = vtanh.pop %v1463
    %v1471 = vmul.f32 %v1469, %v1377
    %1473 = vrot.lane.b32.xlu0 %v1470, 64
    %v1474 = vpop.permute.xlu0 %1473
    %v1476 = vmul.f32 %v1469, %v1474
    %1478 = vrot.lane.b32.xlu0 %v1476, 32
    %v1479 = vpop.permute.xlu0 %1478
    %v1481 = vadd.f32 %v1471, %v1479
    %v1482 = vtanh.pop %v1481
    %1484 = vrot.lane.b32.xlu0 %v1482, 64
    %v1485 = vpop.permute.xlu0 %1484
    %v1487 = vmul.f32 %v1469, %v1485
    %vm1488 = vcmp.gt.s32.totalorder %v218, 10
    %v1489 = vsel %vm1488, 1, 0
    %1490 = vset.pattern.permute.xlu0 0
    %1491 = vperm.xlu0 %1490, %v1489
    %v1492 = vpop.permute.xlu0 %1491
    %vm1493 = vcmp.eq.s32.totalorder %v1492, 1
    %v1494 = vsel %vm1493, %v1481, %v1377
    %v1495 = vsel %vm1493, %v1487, %v1378
    %v1496 = vsel %vm1493, %v1487, 0.0
    %1498 = vrot.lane.b32.xlu0 %v1496, 32
    %v1499 = vpop.permute.xlu0 %1498
    %s1501 = scalar_lea.vmem %s5, 80
    %1502 = vst.msk [vmem:[%s1501] sm:$0xff] %vm224, %v1499
    %s1503 = scalar_lea.vmem [#allocation2], 88
    %v1504 = vld [vmem:[%s1503] sm:$0xff]
    %1506 = vrot.lane.b32.xlu0 %v1495, 32
    %v1507 = vpop.permute.xlu0 %1506
    %v1508 = vsel %vm224, %v1507, 0
    %1510 = vmatprep.subr.mxu0 0.0
    %1511 = vmatpush1.msra.mxu0 %v219
    %1512 = vmatprep.subr.mxu0 0.0
    %1513 = vmatpush1.msra.mxu0 %v220
    %1514 = vmatprep.subr.mxu0 0.0
    %1515 = vmatpush1.msra.mxu0 %v221
    %1516 = vmatprep.subr.mxu0 0.0
    %1517 = vmatpush1.msra.mxu0 %v222
    %1518 = vmatprep.subr.mxu0 0.0
    %1519 = vmatpush1.msra.mxu0 0.0
    %1520 = vmatprep.subr.mxu0 0.0
    %1521 = vmatpush1.msra.mxu0 0.0
    %1522 = vmatprep.subr.mxu0 0.0
    %1523 = vmatpush1.msra.mxu0 0.0
    %1524 = vmatprep.subr.mxu0 0.0
    %1525 = vmatpush1.msra.mxu0 0.0
    %1526 = vmatprep.subr.mxu0 0.0
    %1527 = vmatpush1.msra.mxu0 0.0
    %1528 = vmatprep.subr.mxu0 0.0
    %1529 = vmatpush1.msra.mxu0 0.0
    %1530 = vmatprep.subr.mxu0 0.0
    %1531 = vmatpush1.msra.mxu0 0.0
    %1532 = vmatprep.subr.mxu0 0.0
    %1533 = vmatpush1.msra.mxu0 0.0
    %1534 = vmatprep.subr.mxu0 0.0
    %1535 = vmatpush1.msra.mxu0 0.0
    %1536 = vmatprep.subr.mxu0 0.0
    %1537 = vmatpush1.msra.mxu0 0.0
    %1538 = vmatprep.subr.mxu0 0.0
    %1539 = vmatpush1.msra.mxu0 0.0
    %1540 = vmatprep.subr.mxu0 0.0
    %1541 = vmatpush1.msra.mxu0 0.0
    %1542 = vmatprep.subr.mxu0 0.0
    %1543 = vmatpush1.msra.mxu0 0.0
    %1544 = vmatprep.subr.mxu0 0.0
    %1545 = vmatpush1.msra.mxu0 0.0
    %1546 = vmatprep.subr.mxu0 0.0
    %1547 = vmatpush1.msra.mxu0 0.0
    %1548 = vmatprep.subr.mxu0 0.0
    %1549 = vmatpush1.msra.mxu0 0.0
    %1550 = vmatprep.subr.mxu0 0.0
    %1551 = vmatpush1.msra.mxu0 0.0
    %1552 = vmatprep.subr.mxu0 0.0
    %1553 = vmatpush1.msra.mxu0 0.0
    %1554 = vmatprep.subr.mxu0 0.0
    %1555 = vmatpush1.msra.mxu0 0.0
    %1556 = vmatprep.subr.mxu0 0.0
    %1557 = vmatpush1.msra.mxu0 0.0
    %1558 = vmatprep.subr.mxu0 0.0
    %1559 = vmatpush1.msra.mxu0 0.0
    %1560 = vmatprep.subr.mxu0 0.0
    %1561 = vmatpush1.msra.mxu0 0.0
    %1562 = vmatprep.subr.mxu0 0.0
    %1563 = vmatpush1.msra.mxu0 0.0
    %1564 = vmatprep.subr.mxu0 0.0
    %1565 = vmatpush1.msra.mxu0 0.0
    %1566 = vmatprep.subr.mxu0 0.0
    %1567 = vmatpush1.msra.mxu0 0.0
    %1568 = vmatprep.subr.mxu0 0.0
    %1569 = vmatpush1.msra.mxu0 0.0
    %1570 = vmatprep.subr.mxu0 0.0
    %1571 = vmatpush1.msra.mxu0 0.0
    %1572 = vmatprep.subr.mxu0 0.0
    %1573 = vmatpush1.msra.mxu0 0.0
    %1574 = vmatprep.mubr.f32.mxu0 0.0
    %1575 = vmatmul.mubr.f32.gmra.mrb[0].mxu0 %v1508
    %v1576 = vpop.f32.mrb[0].mxu0
    %v1577 = vadd.f32 0.0, %v1576
    %v1578 = vpop.f32.mrb[0].mxu0
    %1579 = vdwg.mxu0
    %v1580 = vadd.f32 %v1504, %v1577
    %v1581 = vxor.u32 %v1580, 2147483648
    %v1582 = vmul.f32 %v1581, 1.442695
    %v1583 = vpow.pop %v1582
    %v1584 = vadd.f32 %v1583, 1.0
    %v1585 = vrcp.pop %v1584
    %v1586 = vmul.f32 1.0, %v1585
    %v1587 = vtanh.pop %v1580
    %v1588 = vmul.f32 %v1586, %v1494
    %1590 = vrot.lane.b32.xlu0 %v1587, 64
    %v1591 = vpop.permute.xlu0 %1590
    %v1593 = vmul.f32 %v1586, %v1591
    %1595 = vrot.lane.b32.xlu0 %v1593, 32
    %v1596 = vpop.permute.xlu0 %1595
    %v1598 = vadd.f32 %v1588, %v1596
    %v1599 = vtanh.pop %v1598
    %1601 = vrot.lane.b32.xlu0 %v1599, 64
    %v1602 = vpop.permute.xlu0 %1601
    %v1604 = vmul.f32 %v1586, %v1602
    %vm1605 = vcmp.gt.s32.totalorder %v218, 11
    %v1606 = vsel %vm1605, 1, 0
    %1607 = vset.pattern.permute.xlu0 0
    %1608 = vperm.xlu0 %1607, %v1606
    %v1609 = vpop.permute.xlu0 %1608
    %vm1610 = vcmp.eq.s32.totalorder %v1609, 1
    %v1611 = vsel %vm1610, %v1604, %v1495
    %v1612 = vsel %vm1610, %v1604, 0.0
    %1614 = vrot.lane.b32.xlu0 %v1612, 32
    %v1615 = vpop.permute.xlu0 %1614
    %s1617 = scalar_lea.vmem %s5, 88
    %1618 = vst.msk [vmem:[%s1617] sm:$0xff] %vm224, %v1615
    %1620 = vrot.lane.b32.xlu0 %v1611, 32
    %v1621 = vpop.permute.xlu0 %1620
    %1623 = vst.msk [vmem:[#allocation3] sm:$0xff] %vm224, %v1621
    // Predicated region
    $region22: #{tpu_custom_call.1} parent=1 // pred_check
      _
    $region23: #{tpu_custom_call.1} parent=1 // pred_check_branch
      %1625 = sbr.rel (0) target = $region25
    $region24: #{tpu_custom_call.1} parent=1 // pred_region
      _
    $region25: #{tpu_custom_call.1} parent=1 // pred_fallthru
      _
    // Predicated region
    $region26: #{tpu_custom_call.1} parent=1 // pred_check
      _
    $region27: #{tpu_custom_call.1} parent=1 // pred_check_branch
      %1627 = sbr.rel (0) target = $region29
    $region28: #{tpu_custom_call.1} parent=1 // pred_region
      %s1629 = ssub.s32 128, 128
      %1630 = vsyncadd [#allocation4], %s1629
      %s1632 = sshll.u32 [#allocation3], 4
      %s1633 = int_to_ptr.vmem [resolvable:$true] %s1632
      %1635 = dma.vmem_to_hbm [thread:$0]  %s1633, 128, %s6, [#allocation4]
    $region29: #{tpu_custom_call.1} parent=1 // pred_fallthru
      _
    // Predicated region
    $region30: #{tpu_custom_call.1} parent=1 // pred_check
      _
    $region31: #{tpu_custom_call.1} parent=1 // pred_check_branch
      %1637 = sbr.rel (0) target = $region33
    $region32: #{tpu_custom_call.1} parent=1 // pred_region
      _
    $region33: #{tpu_custom_call.1} parent=1 // pred_fallthru
      _
    // Predicated region
    $region34: #{tpu_custom_call.1} parent=1 // pred_check
      _
    $region35: #{tpu_custom_call.1} parent=1 // pred_check_branch
      %1639 = sbr.rel (0) target = $region37
    $region36: #{tpu_custom_call.1} parent=1 // pred_region
      %1640 = dma.done [#allocation4], 128
    $region37: #{tpu_custom_call.1} parent=1 // pred_fallthru
      _
    %1641 = vsyncpa [#allocation4], 1

</llo_original>
